<compile_context>
chip_gen: v7x
topology: tpu7x:2x2x1
jax: 0.10.0
libtpu: 0.0.40
codegen_flags: <defaults>
</compile_context>

<pallas_src>
import jax
import jax.numpy as jnp
from jax.experimental import pallas as pl
from jax.experimental.pallas import tpu as pltpu

IN_FEATURES = 784
OUT_FEATURES = 1
_LANE = 128

DEFAULT_TILE_B = 1024   # v5e/v6e sweet spot at default scoped VMEM; 2048-4096 ok on v7x
MIN_GRID_STEPS = 8      # keep both v7x TensorCores fed and the pipeline warm


def _cdiv(a, b):
    return -(-a // b)


def _round_up(n, m):
    return _cdiv(n, m) * m


def _linear_sigmoid_kernel(x_ref, w_ref, b_ref, o_ref):
    # x_ref: (TILE_B, 784) native dtype VMEM (cast in-kernel; no extra HBM pass)
    # w_ref: (1, 784) f32 VMEM, resident (constant index_map -> fetched once)
    # b_ref: (1,)    f32 SMEM (scalar bias; no padded VMEM tile)
    # o_ref: (1, 1, TILE_B) f32 VMEM — lane-dense output row
    x = x_ref[...].astype(jnp.float32)                       # (TILE_B, 784)
    w = w_ref[...]                                           # (1, 784)
    # (1,784) · (TILE_B,784)^T on the MXU -> (1, TILE_B). The nt-contraction
    # yields a lane-dense result directly (no transpose / relayout), and the
    # MXU is otherwise idle since the kernel is HBM-bandwidth bound.
    z = jax.lax.dot_general(
        w, x,
        dimension_numbers=(((1,), (1,)), ((), ())),
        preferred_element_type=jnp.float32,
        precision=jax.lax.Precision.HIGHEST)
    o_ref[0] = jax.nn.sigmoid(z + b_ref[0]).astype(o_ref.dtype)


def linear2_forward(x, weight, bias, *, tile_b=DEFAULT_TILE_B):
    """x: any shape whose total size is a multiple of 784 (e.g. (B,1,28,28)),
    any float dtype. weight: (1, 784), bias: (1,).  Returns (B, 1) float32."""
    x2d = x.reshape(-1, IN_FEATURES)            # keep native dtype: no extra HBM copy
    B = x2d.shape[0]

    # Tile: multiple of 8 (sublane), at most tile_b, small enough that the
    # 1-D grid keeps >= MIN_GRID_STEPS steps when B is large (megacore + pipeline).
    tile = min(tile_b, _round_up(_cdiv(B, MIN_GRID_STEPS), 8))
    num_tiles = _cdiv(B, tile)                  # ragged tail = partial Pallas block
    grid = (num_tiles,)

    w_row = weight.astype(jnp.float32).reshape(1, IN_FEATURES)
    b1 = bias.astype(jnp.float32).reshape(OUT_FEATURES)

    # Scoped-VMEM budget: double-buffered x tile (lane-padded 784 -> 896) + slack.
    x_buf_bytes = tile * _round_up(IN_FEATURES, _LANE) * x2d.dtype.itemsize
    vmem_limit = int(min(64 << 20, max(32 << 20, 2 * x_buf_bytes + (8 << 20))))

    cost = pl.CostEstimate(
        flops=2 * B * IN_FEATURES,
        transcendentals=B,
        bytes_accessed=int(B * IN_FEATURES * x2d.dtype.itemsize
                           + IN_FEATURES * 4 + B * 4))

    out = pl.pallas_call(
        _linear_sigmoid_kernel,
        out_shape=jax.ShapeDtypeStruct((num_tiles, 1, tile), jnp.float32),
        grid_spec=pltpu.PrefetchScalarGridSpec(
            num_scalar_prefetch=0,
            grid=grid,
            in_specs=[
                # x: one batch tile per grid step (double-buffered by Pallas).
                pl.BlockSpec((tile, IN_FEATURES), lambda i: (i, 0)),
                # weight row: constant index_map -> stays resident in VMEM.
                pl.BlockSpec((1, IN_FEATURES), lambda i: (0, 0)),
                # bias: whole (1,) array in SMEM (scalar read in kernel).
                pl.BlockSpec(memory_space=pltpu.MemorySpace.SMEM),
            ],
            out_specs=pl.BlockSpec((1, 1, tile), lambda i: (i, 0, 0)),
        ),
        compiler_params=pltpu.CompilerParams(
            dimension_semantics=("parallel",),
            vmem_limit_bytes=vmem_limit),
        cost_estimate=cost,
    )(x2d, w_row, b1)

    # (num_tiles, 1, tile) lane-dense rows -> (B, 1); tail-tile garbage sliced off.
    return out.reshape(-1)[:B].reshape(B, OUT_FEATURES)


if __name__ == "__main__":
    key = jax.random.PRNGKey(0)
    kx, kw, kb = jax.random.split(key, 3)

    # Deterministic parameter init (same shapes as nn.Linear(784, 1, bias=True)).
    bound = 1.0 / jnp.sqrt(jnp.float32(IN_FEATURES))
    weight = jax.random.uniform(kw, (OUT_FEATURES, IN_FEATURES),
                                minval=-bound, maxval=bound, dtype=jnp.float32)
    bias = jax.random.uniform(kb, (OUT_FEATURES,),
                              minval=-bound, maxval=bound, dtype=jnp.float32)

    # Small MNIST-like NCHW input with a ragged batch (exercises the
    # partial-last-tile path): (10, 1, 28, 28) -> view(-1, 784).
    x = jax.random.normal(kx, (10, 1, 28, 28), dtype=jnp.float32)

    out = linear2_forward(x, weight, bias)
    jax.block_until_ready(out)

    # Reference check in plain JAX.
    ref = jax.nn.sigmoid(
        jnp.dot(x.reshape(-1, IN_FEATURES), weight.T,
                precision=jax.lax.Precision.HIGHEST) + bias)
    assert out.shape == (10, 1), out.shape
    assert jnp.allclose(out, ref, atol=2e-3, rtol=2e-3), \
        float(jnp.max(jnp.abs(out - ref)))

    print("KERNEL_OK")
</pallas_src>

<mosaic_0001>
module attributes {stable_mosaic.version = 11 : i64} {
  func.func @_linear_sigmoid_kernel(%arg0: i32, %arg1: memref<8x784xf32, #tpu.memory_space<vmem>>, %arg2: memref<1x784xf32, #tpu.memory_space<vmem>>, %arg3: memref<1xf32, #tpu.memory_space<smem>>, %arg4: memref<1x1x8xf32, #tpu.memory_space<vmem>>) attributes {dimension_semantics = [#tpu.dimension_semantics<parallel>], iteration_bounds = array<i64: 2>, scalar_prefetch = 0 : i64, scratch_operands = 0 : i64, tpu.core_type = #tpu.core_type<tc>, window_params = [{transform_indices = @transform_0, window_bounds = array<i64: 8, 784>}, {pipeline_mode = #tpu.pipeline_mode<synchronous>, transform_indices = @transform_1, window_bounds = array<i64: 1, 784>}, {transform_indices = @transform_2, window_bounds = array<i64: 1>}, {transform_indices = @transform_3, window_bounds = array<i64: 1, 1, 8>}]} {
    %c0 = arith.constant 0 : index
    %c0_0 = arith.constant 0 : index
    %0 = vector.load %arg1[%c0, %c0_0] : memref<8x784xf32, #tpu.memory_space<vmem>>, vector<8x784xf32>
    %c0_1 = arith.constant 0 : index
    %c0_2 = arith.constant 0 : index
    %1 = vector.load %arg2[%c0_1, %c0_2] : memref<1x784xf32, #tpu.memory_space<vmem>>, vector<1x784xf32>
    %cst = arith.constant dense<0.000000e+00> : vector<1x8xf32>
    %2 = tpu.matmul %1, %0, %cst {dimension_numbers = #tpu.dot_dimension_numbers<[1], [1], [0], [0], [0, 0, 1, 0], [], []>, precision = #tpu.contract_precision<fp32>} : vector<1x784xf32>, vector<8x784xf32>, vector<1x8xf32> -> vector<1x8xf32>
    %c0_3 = arith.constant 0 : index
    %3 = memref.load %arg3[%c0_3] : memref<1xf32, #tpu.memory_space<smem>>
    %4 = vector.broadcast %3 : f32 to vector<1x8xf32>
    %5 = arith.addf %2, %4 : vector<1x8xf32>
    %6 = arith.negf %5 : vector<1x8xf32>
    %7 = math.exp %6 : vector<1x8xf32>
    %cst_4 = arith.constant 1.000000e+00 : f32
    %8 = vector.broadcast %cst_4 : f32 to vector<1x8xf32>
    %9 = arith.addf %8, %7 : vector<1x8xf32>
    %10 = arith.divf %8, %9 : vector<1x8xf32>
    %c0_5 = arith.constant 0 : index
    %c0_6 = arith.constant 0 : index
    %c0_7 = arith.constant 0 : index
    %11 = vector.load %arg4[%c0_5, %c0_6, %c0_7] : memref<1x1x8xf32, #tpu.memory_space<vmem>>, vector<1x1x8xf32>
    %12 = vector.shape_cast %11 : vector<1x1x8xf32> to vector<1x8xf32>
    %13 = vector.shape_cast %10 : vector<1x8xf32> to vector<1x1x8xf32>
    tpu.vector_store %arg4[%c0_5, %c0_6, %c0_7], %13 {strides = array<i32>} : memref<1x1x8xf32, #tpu.memory_space<vmem>>, vector<1x1x8xf32>,
    return
  }
  func.func @transform_0(%arg0: i32) -> (i32, i32) {
    %c0_i32 = arith.constant 0 : i32
    %c0_i32_0 = arith.constant 0 : i32
    return %arg0, %c0_i32 : i32, i32
  }
  func.func @transform_1(%arg0: i32) -> (i32, i32) {
    %c0_i32 = arith.constant 0 : i32
    %c0_i32_0 = arith.constant 0 : i32
    %c0_i32_1 = arith.constant 0 : i32
    return %c0_i32, %c0_i32_0 : i32, i32
  }
  func.func @transform_2(%arg0: i32) -> i32 {
    %c0_i32 = arith.constant 0 : i32
    %c0_i32_0 = arith.constant 0 : i32
    return %c0_i32 : i32
  }
  func.func @transform_3(%arg0: i32) -> (i32, i32, i32) {
    %c0_i32 = arith.constant 0 : i32
    %c0_i32_0 = arith.constant 0 : i32
    %c0_i32_1 = arith.constant 0 : i32
    return %arg0, %c0_i32, %c0_i32_0 : i32, i32, i32
  }
}

</mosaic_0001>

<llo_original>
// kernel: tpu_custom_call.1
$region0: #{tpu_custom_call.1}
  #allocation0 [shape = 'u32[]', space=smem, size = 0x4, offset = 0x4, fixed_abs, tag = 'smem constant byte address 0x4 - core index']
  #allocation1 [shape = 'u32[144,128]{1,0:T(1,128)}', space=vmem, size = 0x12000, scoped, tag = 'internal scratch']
  #allocation2 [shape = 'f32[1]{0:T(128)S(6)}', space=smem, size = 0x200, scoped, tag = 'scoped memory for tpu_custom_call.1']
  %s0 = inlined_call_operand.hbm [shape: f32[10,784], index: 0, kind: input, shape index: {}]
  %s1 = inlined_call_operand.vmem [shape: f32[1,784], index: 1, kind: input, shape index: {}]
  %s2 = inlined_call_operand.<no memory space> [shape: f32[1], index: 2, kind: input, shape index: {}]
  %s3 = inlined_call_operand.hbm [shape: f32[2,1,8], index: 3, kind: output, shape index: {}]
  %s4 = sld [smem:[#allocation0]]
  $region49: #{tpu_custom_call.1} parent=0
    _
  %s6 = ssub.s32 1, %s4
  %s7 = scalar_select 0, %s6, %s4
  %8 = sst [smem:[#allocation2]] %s2
  $region1: #{tpu_custom_call.1} parent=0
    #allocation3 [shape = 'u8[57344]{0}', space=vmem, size = 0xe000, scoped, tag = 'input window, operand 0']
    #allocation4 [shape = 's32[2]{0}', space=sflag, size = 0x8, scoped, tag = 'scoped memory for tpu_custom_call.1']
    #allocation5 [shape = 's32[2]{0}', space=sflag, size = 0x8, scoped, tag = 'scoped memory for tpu_custom_call.1']
    #allocation6 [shape = 'u8[1024]{0}', space=vmem, size = 0x400, scoped, tag = 'output window, operand 0']
    %9 = vsyncpa [#allocation4], 0
    %s10 = scalar_lea.sflag [#allocation4], 1
    %11 = vsyncpa %s10, 0
    %12 = vsyncpa [#allocation5], 0
    %s13 = scalar_lea.sflag [#allocation5], 1
    %14 = vsyncpa %s13, 0
    loop: start=0, step=1, limit=4
    $region2: #{tpu_custom_call.1} parent=1 // loop_pre_header
      _
    $region3: #{tpu_custom_call.1} parent=1 // loop_header
      %s16 = sphi 0, %s20
      %p17 = scmp.ge.s32.totalorder %s16, 4
      %s26 = sphi 0, %s28
      %s29 = sphi 0, %s26
      %s30 = sphi 0, %s29
      %s46 = sphi 0, %s30
      %s50 = sphi 0, %s50
      %s52 = sphi 0, %s50
      %s53 = sphi 0, %s52
      %s67 = sphi 0, %s53
      %s71 = sphi 0, %s71
      %s73 = sphi 0, %s71
      %s74 = sphi 0, %s73
      %s88 = sphi 0, %s74
      %s94 = sphi 0, %s96
      %s97 = sphi 0, %s94
      %s98 = sphi 0, %s97
      %s114 = sphi 0, %s98
    $region4: #{tpu_custom_call.1} parent=1 // loop_header_branch
      %19 = sbr.rel (%p17) target = $region8
    $region5: #{tpu_custom_call.1} parent=1 // loop_body
      %s21 = ssub.s32 %s16, 1
      %s22 = ssub.s32 %s16, 2
      %s23 = sadd.s32 %s16, 1
      %s24 = ssub.s32 %s16, %s23
      %p25 = scmp.eq.s32.totalorder %s24, 0
      %s27 = sadd.s32 %s26, 1
      %s28 = scalar_select %p25, %s26, %s27
      %p31 = pneg %p25
      %p32 = scmp.eq.s32.totalorder %s16, 1
      %p33 = por %p31, %p32
      %p34 = scmp.ne.s32.totalorder %s26, %s29
      %p35 = scmp.eq.s32.totalorder %s16, 0
      %p36 = por %p34, %p35
      %p37 = scmp.ne.s32.totalorder %s26, %s29
      %p38 = scmp.eq.s32.totalorder %s21, 1
      %p39 = por %p37, %p38
      %p40 = scmp.ne.s32.totalorder %s29, %s30
      %p41 = scmp.eq.s32.totalorder %s21, 0
      %p42 = por %p40, %p41
      %p43 = scmp.ne.s32.totalorder %s29, %s30
      %p44 = scmp.eq.s32.totalorder %s22, 1
      %p45 = por %p43, %p44
      %p47 = scmp.ne.s32.totalorder %s30, %s46
      %p48 = scmp.eq.s32.totalorder %s22, 0
      %p49 = por %p47, %p48
      %s51 = sadd.s32 %s50, 1
      %p54 = scmp.eq.s32.totalorder %s16, 1
      %p55 = scmp.ne.s32.totalorder %s50, %s52
      %p56 = scmp.eq.s32.totalorder %s16, 0
      %p57 = por %p55, %p56
      %p58 = scmp.ne.s32.totalorder %s50, %s52
      %p59 = scmp.eq.s32.totalorder %s21, 1
      %p60 = por %p58, %p59
      %p61 = scmp.ne.s32.totalorder %s52, %s53
      %p62 = scmp.eq.s32.totalorder %s21, 0
      %p63 = por %p61, %p62
      %p64 = scmp.ne.s32.totalorder %s52, %s53
      %p65 = scmp.eq.s32.totalorder %s22, 1
      %p66 = por %p64, %p65
      %p68 = scmp.ne.s32.totalorder %s53, %s67
      %p69 = scmp.eq.s32.totalorder %s22, 0
      %p70 = por %p68, %p69
      %s72 = sadd.s32 %s71, 1
      %p75 = scmp.eq.s32.totalorder %s16, 1
      %p76 = scmp.ne.s32.totalorder %s71, %s73
      %p77 = scmp.eq.s32.totalorder %s16, 0
      %p78 = por %p76, %p77
      %p79 = scmp.ne.s32.totalorder %s71, %s73
      %p80 = scmp.eq.s32.totalorder %s21, 1
      %p81 = por %p79, %p80
      %p82 = scmp.ne.s32.totalorder %s73, %s74
      %p83 = scmp.eq.s32.totalorder %s21, 0
      %p84 = por %p82, %p83
      %p85 = scmp.ne.s32.totalorder %s73, %s74
      %p86 = scmp.eq.s32.totalorder %s22, 1
      %p87 = por %p85, %p86
      %p89 = scmp.ne.s32.totalorder %s74, %s88
      %p90 = scmp.eq.s32.totalorder %s22, 0
      %p91 = por %p89, %p90
      %s92 = ssub.s32 %s16, %s23
      %p93 = scmp.eq.s32.totalorder %s92, 0
      %s95 = sadd.s32 %s94, 1
      %s96 = scalar_select %p93, %s94, %s95
      %p99 = pneg %p93
      %p100 = scmp.eq.s32.totalorder %s16, 1
      %p101 = por %p99, %p100
      %p102 = scmp.ne.s32.totalorder %s94, %s97
      %p103 = scmp.eq.s32.totalorder %s16, 0
      %p104 = por %p102, %p103
      %p105 = scmp.ne.s32.totalorder %s94, %s97
      %p106 = scmp.eq.s32.totalorder %s21, 1
      %p107 = por %p105, %p106
      %p108 = scmp.ne.s32.totalorder %s97, %s98
      %p109 = scmp.eq.s32.totalorder %s21, 0
      %p110 = por %p108, %p109
      %p111 = scmp.ne.s32.totalorder %s97, %s98
      %p112 = scmp.eq.s32.totalorder %s22, 1
      %p113 = por %p111, %p112
      %p115 = scmp.ne.s32.totalorder %s98, %s114
      %p116 = scmp.eq.s32.totalorder %s22, 0
      %p117 = por %p115, %p116
      %p118 = scmp.le.s32.totalorder 1, %s16
      %p119 = scmp.lt.s32.totalorder %s16, 3
      %p120 = pnand %p118, %p119
      %p121 = pneg %p120
      // Predicated region
      $region9: #{tpu_custom_call.1} parent=5 // pred_check
        _
      $region10: #{tpu_custom_call.1} parent=5 // pred_check_branch
        %123 = sbr.rel (%p120) target = $region12
      $region11: #{tpu_custom_call.1} parent=5 // pred_region
        %s124 = ssub.s32 %s16, 1
        // Predicated region
        $region13: #{tpu_custom_call.1} parent=11 // pred_check
          %p125 = pneg %p63
        $region14: #{tpu_custom_call.1} parent=11 // pred_check_branch
          %127 = sbr.rel (%p125) target = $region16
        $region15: #{tpu_custom_call.1} parent=11 // pred_region
          _
        $region16: #{tpu_custom_call.1} parent=11 // pred_fallthru
          _
        // Predicated region
        $region17: #{tpu_custom_call.1} parent=11 // pred_check
          %p128 = pneg %p84
        $region18: #{tpu_custom_call.1} parent=11 // pred_check_branch
          %130 = sbr.rel (%p128) target = $region20
        $region19: #{tpu_custom_call.1} parent=11 // pred_region
          _
        $region20: #{tpu_custom_call.1} parent=11 // pred_fallthru
          _
      $region12: #{tpu_custom_call.1} parent=5 // pred_fallthru
        _
      %p131 = scmp.lt.s32.totalorder %s16, 2
      // Predicated region
      $region21: #{tpu_custom_call.1} parent=5 // pred_check
        %p132 = pneg %p131
      $region22: #{tpu_custom_call.1} parent=5 // pred_check_branch
        %134 = sbr.rel (%p132) target = $region24
      $region23: #{tpu_custom_call.1} parent=5 // pred_region
        // Predicated region
        $region25: #{tpu_custom_call.1} parent=23 // pred_check
          %p135 = pneg %p36
        $region26: #{tpu_custom_call.1} parent=23 // pred_check_branch
          %137 = sbr.rel (%p135) target = $region28
        $region27: #{tpu_custom_call.1} parent=23 // pred_region
          %s138 = sand.u32 %s26, 1
          %s139 = scalar_lea.sflag [#allocation4], %s138
          %s140 = sand.u32 %s26, 1
          %s141 = smul.addr %s140, 56
          %s142 = scalar_lea.vmem [#allocation3], %s141
          %s144 = ssub.s32 896, 896
          %145 = vsyncadd %s139, %s144
          %s146 = smul.addr %s16, 7
          %s147 = smul.addr %s146, 128
          %s148 = scalar_lea.hbm %s0, %s147
          %s150 = sshll.u32 %s142, 4
          %s151 = int_to_ptr.vmem [resolvable:$true] %s150
          %153 = dma.hbm_to_vmem [thread:$0]  %s148, 896, %s151, %s139
        $region28: #{tpu_custom_call.1} parent=23 // pred_fallthru
          _
      $region24: #{tpu_custom_call.1} parent=5 // pred_fallthru
        _
      %p154 = scmp.le.s32.totalorder 1, %s16
      %p155 = scmp.lt.s32.totalorder %s16, 3
      %p156 = pnand %p154, %p155
      %p157 = pneg %p156
      // Predicated region
      $region29: #{tpu_custom_call.1} parent=5 // pred_check
        _
      $region30: #{tpu_custom_call.1} parent=5 // pred_check_branch
        %159 = sbr.rel (%p156) target = $region32
      $region31: #{tpu_custom_call.1} parent=5 // pred_region
        %s160 = ssub.s32 %s16, 1
        %s161 = sand.u32 %s29, 1
        %s162 = scalar_lea.sflag [#allocation4], %s161
        %s163 = sand.u32 %s29, 1
        %s164 = smul.addr %s163, 56
        %s165 = scalar_lea.vmem [#allocation3], %s164
        // Predicated region
        $region33: #{tpu_custom_call.1} parent=31 // pred_check
          %p166 = pneg %p42
        $region34: #{tpu_custom_call.1} parent=31 // pred_check_branch
          %168 = sbr.rel (%p166) target = $region36
        $region35: #{tpu_custom_call.1} parent=31 // pred_region
          %169 = dma.done %s162, 896
        $region36: #{tpu_custom_call.1} parent=31 // pred_fallthru
          _
        %s170 = sand.u32 %s29, 1
        %s171 = scalar_lea.sflag [#allocation4], %s170
        %s172 = sand.u32 %s29, 1
        %s173 = smul.addr %s172, 56
        %s174 = scalar_lea.vmem [#allocation3], %s173
        %p175 = pneg %p42
        %p176 = pneg %p39
        %p177 = pneg %p63
        %p178 = pneg %p60
        %p179 = pneg %p84
        %p180 = pneg %p81
        %p181 = pneg %p110
        %p182 = pneg %p107
        %s183 = sand.u32 %s97, 1
        %s184 = scalar_lea.sflag [#allocation5], %s183
        %s185 = sand.u32 %s97, 1
        %s186 = scalar_lea.vmem [#allocation6], %s185
        %v187 = vld [vmem:[%s165] sm:$0xff]
        %v188 = vld [vmem:[%s165 + $0x8] sm:$0xff]
        %v189 = vld [vmem:[%s165 + $0x10] sm:$0xff]
        %v190 = vld [vmem:[%s165 + $0x18] sm:$0xff]
        %v191 = vld [vmem:[%s165 + $0x20] sm:$0xff]
        %v192 = vld [vmem:[%s165 + $0x28] sm:$0xff]
        %v193 = vld [vmem:[%s165 + $0x30] sm:$0xff]
        %v194 = vld [vmem:[%s1] sm:$0x7f]
        %s195 = sld [smem:[#allocation2]]
        %v196 = vstv %s195
        %v198 = vlaneseq
        %v199 = vshrl.u32 %v198, 7
        %v200 = vsub.s32 0, %v199
        %v201 = vrot.slane %v194, %v200
        %v202 = vlaneseq
        %v203 = vshrl.u32 %v202, 7
        %v204 = vsub.s32 1, %v203
        %v205 = vrot.slane %v194, %v204
        %v206 = vlaneseq
        %v207 = vshrl.u32 %v206, 7
        %v208 = vsub.s32 2, %v207
        %v209 = vrot.slane %v194, %v208
        %v210 = vlaneseq
        %v211 = vshrl.u32 %v210, 7
        %v212 = vsub.s32 3, %v211
        %v213 = vrot.slane %v194, %v212
        %v214 = vlaneseq
        %v215 = vshrl.u32 %v214, 7
        %v216 = vsub.s32 4, %v215
        %v217 = vrot.slane %v194, %v216
        %v218 = vlaneseq
        %v219 = vshrl.u32 %v218, 7
        %v220 = vsub.s32 5, %v219
        %v221 = vrot.slane %v194, %v220
        %v222 = vlaneseq
        %v223 = vshrl.u32 %v222, 7
        %v224 = vsub.s32 6, %v223
        %v225 = vrot.slane %v194, %v224
        %vm232 = vcmask 130048
        %v233 = vsel %vm232, %v225, 0
        %v236 = vsel %vm232, %v193, 0
        %v238 = vand.u32 %v188, 4294901760
        %239 = vmatprep.subr.mxu0 %v238
        %v240 = vand.u32 %v187, 4294901760
        %241 = vmatpush1.xpose.msra.mxu0 %v240
        %242 = vmatprep.subr.mxu0 0.0
        %243 = vmatpush1.xpose.msra.mxu0 0.0
        %244 = vmatprep.subr.mxu0 0.0
        %245 = vmatpush1.xpose.msra.mxu0 0.0
        %246 = vmatprep.subr.mxu0 0.0
        %247 = vmatpush1.xpose.msra.mxu0 0.0
        %248 = vmatprep.subr.mxu0 0.0
        %249 = vmatpush1.xpose.msra.mxu0 0.0
        %250 = vmatprep.subr.mxu0 0.0
        %251 = vmatpush1.xpose.msra.mxu0 0.0
        %252 = vmatprep.subr.mxu0 0.0
        %253 = vmatpush1.xpose.msra.mxu0 0.0
        %254 = vmatprep.subr.mxu0 0.0
        %255 = vmatpush1.xpose.msra.mxu0 0.0
        %256 = vmatprep.subr.mxu0 0.0
        %257 = vmatpush1.xpose.msra.mxu0 0.0
        %258 = vmatprep.subr.mxu0 0.0
        %259 = vmatpush1.xpose.msra.mxu0 0.0
        %260 = vmatprep.subr.mxu0 0.0
        %261 = vmatpush1.xpose.msra.mxu0 0.0
        %262 = vmatprep.subr.mxu0 0.0
        %263 = vmatpush1.xpose.msra.mxu0 0.0
        %264 = vmatprep.subr.mxu0 0.0
        %265 = vmatpush1.xpose.msra.mxu0 0.0
        %266 = vmatprep.subr.mxu0 0.0
        %267 = vmatpush1.xpose.msra.mxu0 0.0
        %268 = vmatprep.subr.mxu0 0.0
        %269 = vmatpush1.xpose.msra.mxu0 0.0
        %270 = vmatprep.subr.mxu0 0.0
        %271 = vmatpush1.xpose.msra.mxu0 0.0
        %272 = vmatprep.subr.mxu0 0.0
        %273 = vmatpush1.xpose.msra.mxu0 0.0
        %274 = vmatprep.subr.mxu0 0.0
        %275 = vmatpush1.xpose.msra.mxu0 0.0
        %276 = vmatprep.subr.mxu0 0.0
        %277 = vmatpush1.xpose.msra.mxu0 0.0
        %278 = vmatprep.subr.mxu0 0.0
        %279 = vmatpush1.xpose.msra.mxu0 0.0
        %280 = vmatprep.subr.mxu0 0.0
        %281 = vmatpush1.xpose.msra.mxu0 0.0
        %282 = vmatprep.subr.mxu0 0.0
        %283 = vmatpush1.xpose.msra.mxu0 0.0
        %284 = vmatprep.subr.mxu0 0.0
        %285 = vmatpush1.xpose.msra.mxu0 0.0
        %286 = vmatprep.subr.mxu0 0.0
        %287 = vmatpush1.xpose.msra.mxu0 0.0
        %288 = vmatprep.subr.mxu0 0.0
        %289 = vmatpush1.xpose.msra.mxu0 0.0
        %290 = vmatprep.subr.mxu0 0.0
        %291 = vmatpush1.xpose.msra.mxu0 0.0
        %292 = vmatprep.subr.mxu0 0.0
        %293 = vmatpush1.xpose.msra.mxu0 0.0
        %294 = vmatprep.subr.mxu0 0.0
        %295 = vmatpush1.xpose.msra.mxu0 0.0
        %296 = vmatprep.subr.mxu0 0.0
        %297 = vmatpush1.xpose.msra.mxu0 0.0
        %298 = vmatprep.subr.mxu0 0.0
        %299 = vmatpush1.xpose.msra.mxu0 0.0
        %300 = vmatprep.subr.mxu0 0.0
        %301 = vmatpush1.xpose.msra.mxu0 0.0
        %302 = vmatprep.subr.mxu0 0.0
        %303 = vmatpush1.xpose.msra.mxu0 0.0
        %v304 = vand.u32 %v205, 4294901760
        %v305 = vsub.f32 %v205, %v304
        %v306 = vand.u32 %v305, 4294901760
        %v307 = vsub.f32 %v305, %v306
        %v308 = vand.u32 %v307, 4294901760
        %309 = vmatprep.mubr.f32.mxu0 %v308
        %v310 = vand.u32 %v201, 4294901760
        %v311 = vsub.f32 %v201, %v310
        %v312 = vand.u32 %v311, 4294901760
        %v313 = vsub.f32 %v311, %v312
        %v314 = vand.u32 %v313, 4294901760
        %315 = vmatmul.mubr.f32.gmra.mrb[0].mxu0 %v314
        %v316 = vpop.f32.mrb[0].mxu0
        %v317 = vadd.f32 %v196, %v316
        %v318 = vpop.f32.mrb[0].mxu0
        %319 = vdwg.mxu0
        %v320 = vand.u32 %v188, 4294901760
        %v321 = vsub.f32 %v188, %v320
        %v322 = vand.u32 %v321, 4294901760
        %v323 = vsub.f32 %v321, %v322
        %v324 = vand.u32 %v323, 4294901760
        %325 = vmatprep.subr.mxu0 %v324
        %v326 = vand.u32 %v187, 4294901760
        %v327 = vsub.f32 %v187, %v326
        %v328 = vand.u32 %v327, 4294901760
        %v329 = vsub.f32 %v327, %v328
        %v330 = vand.u32 %v329, 4294901760
        %331 = vmatpush1.xpose.msra.mxu0 %v330
        %332 = vmatprep.subr.mxu0 0.0
        %333 = vmatpush1.xpose.msra.mxu0 0.0
        %334 = vmatprep.subr.mxu0 0.0
        %335 = vmatpush1.xpose.msra.mxu0 0.0
        %336 = vmatprep.subr.mxu0 0.0
        %337 = vmatpush1.xpose.msra.mxu0 0.0
        %338 = vmatprep.subr.mxu0 0.0
        %339 = vmatpush1.xpose.msra.mxu0 0.0
        %340 = vmatprep.subr.mxu0 0.0
        %341 = vmatpush1.xpose.msra.mxu0 0.0
        %342 = vmatprep.subr.mxu0 0.0
        %343 = vmatpush1.xpose.msra.mxu0 0.0
        %344 = vmatprep.subr.mxu0 0.0
        %345 = vmatpush1.xpose.msra.mxu0 0.0
        %346 = vmatprep.subr.mxu0 0.0
        %347 = vmatpush1.xpose.msra.mxu0 0.0
        %348 = vmatprep.subr.mxu0 0.0
        %349 = vmatpush1.xpose.msra.mxu0 0.0
        %350 = vmatprep.subr.mxu0 0.0
        %351 = vmatpush1.xpose.msra.mxu0 0.0
        %352 = vmatprep.subr.mxu0 0.0
        %353 = vmatpush1.xpose.msra.mxu0 0.0
        %354 = vmatprep.subr.mxu0 0.0
        %355 = vmatpush1.xpose.msra.mxu0 0.0
        %356 = vmatprep.subr.mxu0 0.0
        %357 = vmatpush1.xpose.msra.mxu0 0.0
        %358 = vmatprep.subr.mxu0 0.0
        %359 = vmatpush1.xpose.msra.mxu0 0.0
        %360 = vmatprep.subr.mxu0 0.0
        %361 = vmatpush1.xpose.msra.mxu0 0.0
        %362 = vmatprep.subr.mxu0 0.0
        %363 = vmatpush1.xpose.msra.mxu0 0.0
        %364 = vmatprep.subr.mxu0 0.0
        %365 = vmatpush1.xpose.msra.mxu0 0.0
        %366 = vmatprep.subr.mxu0 0.0
        %367 = vmatpush1.xpose.msra.mxu0 0.0
        %368 = vmatprep.subr.mxu0 0.0
        %369 = vmatpush1.xpose.msra.mxu0 0.0
        %370 = vmatprep.subr.mxu0 0.0
        %371 = vmatpush1.xpose.msra.mxu0 0.0
        %372 = vmatprep.subr.mxu0 0.0
        %373 = vmatpush1.xpose.msra.mxu0 0.0
        %374 = vmatprep.subr.mxu0 0.0
        %375 = vmatpush1.xpose.msra.mxu0 0.0
        %376 = vmatprep.subr.mxu0 0.0
        %377 = vmatpush1.xpose.msra.mxu0 0.0
        %378 = vmatprep.subr.mxu0 0.0
        %379 = vmatpush1.xpose.msra.mxu0 0.0
        %380 = vmatprep.subr.mxu0 0.0
        %381 = vmatpush1.xpose.msra.mxu0 0.0
        %382 = vmatprep.subr.mxu0 0.0
        %383 = vmatpush1.xpose.msra.mxu0 0.0
        %384 = vmatprep.subr.mxu0 0.0
        %385 = vmatpush1.xpose.msra.mxu0 0.0
        %386 = vmatprep.subr.mxu0 0.0
        %387 = vmatpush1.xpose.msra.mxu0 0.0
        %388 = vmatprep.subr.mxu0 0.0
        %389 = vmatpush1.xpose.msra.mxu0 0.0
        %390 = vmatprep.subr.mxu0 0.0
        %391 = vmatpush1.xpose.msra.mxu0 0.0
        %392 = vmatprep.subr.mxu0 0.0
        %393 = vmatpush1.xpose.msra.mxu0 0.0
        %v394 = vand.u32 %v205, 4294901760
        %395 = vmatprep.mubr.f32.mxu0 %v394
        %v396 = vand.u32 %v201, 4294901760
        %397 = vmatmul.mubr.f32.gmra.mrb[0].mxu0 %v396
        %v398 = vpop.f32.mrb[0].mxu0
        %v399 = vadd.f32 %v317, %v398
        %v400 = vpop.f32.mrb[0].mxu0
        %401 = vdwg.mxu0
        %v402 = vand.u32 %v188, 4294901760
        %v403 = vsub.f32 %v188, %v402
        %404 = vmatprep.subr.mxu0 %v403
        %v405 = vand.u32 %v187, 4294901760
        %v406 = vsub.f32 %v187, %v405
        %407 = vmatpush1.xpose.msra.mxu0 %v406
        %408 = vmatprep.subr.mxu0 0.0
        %409 = vmatpush1.xpose.msra.mxu0 0.0
        %410 = vmatprep.subr.mxu0 0.0
        %411 = vmatpush1.xpose.msra.mxu0 0.0
        %412 = vmatprep.subr.mxu0 0.0
        %413 = vmatpush1.xpose.msra.mxu0 0.0
        %414 = vmatprep.subr.mxu0 0.0
        %415 = vmatpush1.xpose.msra.mxu0 0.0
        %416 = vmatprep.subr.mxu0 0.0
        %417 = vmatpush1.xpose.msra.mxu0 0.0
        %418 = vmatprep.subr.mxu0 0.0
        %419 = vmatpush1.xpose.msra.mxu0 0.0
        %420 = vmatprep.subr.mxu0 0.0
        %421 = vmatpush1.xpose.msra.mxu0 0.0
        %422 = vmatprep.subr.mxu0 0.0
        %423 = vmatpush1.xpose.msra.mxu0 0.0
        %424 = vmatprep.subr.mxu0 0.0
        %425 = vmatpush1.xpose.msra.mxu0 0.0
        %426 = vmatprep.subr.mxu0 0.0
        %427 = vmatpush1.xpose.msra.mxu0 0.0
        %428 = vmatprep.subr.mxu0 0.0
        %429 = vmatpush1.xpose.msra.mxu0 0.0
        %430 = vmatprep.subr.mxu0 0.0
        %431 = vmatpush1.xpose.msra.mxu0 0.0
        %432 = vmatprep.subr.mxu0 0.0
        %433 = vmatpush1.xpose.msra.mxu0 0.0
        %434 = vmatprep.subr.mxu0 0.0
        %435 = vmatpush1.xpose.msra.mxu0 0.0
        %436 = vmatprep.subr.mxu0 0.0
        %437 = vmatpush1.xpose.msra.mxu0 0.0
        %438 = vmatprep.subr.mxu0 0.0
        %439 = vmatpush1.xpose.msra.mxu0 0.0
        %440 = vmatprep.subr.mxu0 0.0
        %441 = vmatpush1.xpose.msra.mxu0 0.0
        %442 = vmatprep.subr.mxu0 0.0
        %443 = vmatpush1.xpose.msra.mxu0 0.0
        %444 = vmatprep.subr.mxu0 0.0
        %445 = vmatpush1.xpose.msra.mxu0 0.0
        %446 = vmatprep.subr.mxu0 0.0
        %447 = vmatpush1.xpose.msra.mxu0 0.0
        %448 = vmatprep.subr.mxu0 0.0
        %449 = vmatpush1.xpose.msra.mxu0 0.0
        %450 = vmatprep.subr.mxu0 0.0
        %451 = vmatpush1.xpose.msra.mxu0 0.0
        %452 = vmatprep.subr.mxu0 0.0
        %453 = vmatpush1.xpose.msra.mxu0 0.0
        %454 = vmatprep.subr.mxu0 0.0
        %455 = vmatpush1.xpose.msra.mxu0 0.0
        %456 = vmatprep.subr.mxu0 0.0
        %457 = vmatpush1.xpose.msra.mxu0 0.0
        %458 = vmatprep.subr.mxu0 0.0
        %459 = vmatpush1.xpose.msra.mxu0 0.0
        %460 = vmatprep.subr.mxu0 0.0
        %461 = vmatpush1.xpose.msra.mxu0 0.0
        %462 = vmatprep.subr.mxu0 0.0
        %463 = vmatpush1.xpose.msra.mxu0 0.0
        %464 = vmatprep.subr.mxu0 0.0
        %465 = vmatpush1.xpose.msra.mxu0 0.0
        %466 = vmatprep.subr.mxu0 0.0
        %467 = vmatpush1.xpose.msra.mxu0 0.0
        %468 = vmatprep.subr.mxu0 0.0
        %469 = vmatpush1.xpose.msra.mxu0 0.0
        %v470 = vand.u32 %v205, 4294901760
        %v471 = vsub.f32 %v205, %v470
        %472 = vmatprep.mubr.f32.mxu0 %v471
        %v473 = vand.u32 %v201, 4294901760
        %v474 = vsub.f32 %v201, %v473
        %475 = vmatmul.mubr.f32.gmra.mrb[0].mxu0 %v474
        %v476 = vpop.f32.mrb[0].mxu0
        %v477 = vadd.f32 %v399, %v476
        %v478 = vpop.f32.mrb[0].mxu0
        %479 = vdwg.mxu0
        %v480 = vand.u32 %v188, 4294901760
        %481 = vmatprep.subr.mxu0 %v480
        %v482 = vand.u32 %v187, 4294901760
        %483 = vmatpush1.xpose.msra.mxu0 %v482
        %484 = vmatprep.subr.mxu0 0.0
        %485 = vmatpush1.xpose.msra.mxu0 0.0
        %486 = vmatprep.subr.mxu0 0.0
        %487 = vmatpush1.xpose.msra.mxu0 0.0
        %488 = vmatprep.subr.mxu0 0.0
        %489 = vmatpush1.xpose.msra.mxu0 0.0
        %490 = vmatprep.subr.mxu0 0.0
        %491 = vmatpush1.xpose.msra.mxu0 0.0
        %492 = vmatprep.subr.mxu0 0.0
        %493 = vmatpush1.xpose.msra.mxu0 0.0
        %494 = vmatprep.subr.mxu0 0.0
        %495 = vmatpush1.xpose.msra.mxu0 0.0
        %496 = vmatprep.subr.mxu0 0.0
        %497 = vmatpush1.xpose.msra.mxu0 0.0
        %498 = vmatprep.subr.mxu0 0.0
        %499 = vmatpush1.xpose.msra.mxu0 0.0
        %500 = vmatprep.subr.mxu0 0.0
        %501 = vmatpush1.xpose.msra.mxu0 0.0
        %502 = vmatprep.subr.mxu0 0.0
        %503 = vmatpush1.xpose.msra.mxu0 0.0
        %504 = vmatprep.subr.mxu0 0.0
        %505 = vmatpush1.xpose.msra.mxu0 0.0
        %506 = vmatprep.subr.mxu0 0.0
        %507 = vmatpush1.xpose.msra.mxu0 0.0
        %508 = vmatprep.subr.mxu0 0.0
        %509 = vmatpush1.xpose.msra.mxu0 0.0
        %510 = vmatprep.subr.mxu0 0.0
        %511 = vmatpush1.xpose.msra.mxu0 0.0
        %512 = vmatprep.subr.mxu0 0.0
        %513 = vmatpush1.xpose.msra.mxu0 0.0
        %514 = vmatprep.subr.mxu0 0.0
        %515 = vmatpush1.xpose.msra.mxu0 0.0
        %516 = vmatprep.subr.mxu0 0.0
        %517 = vmatpush1.xpose.msra.mxu0 0.0
        %518 = vmatprep.subr.mxu0 0.0
        %519 = vmatpush1.xpose.msra.mxu0 0.0
        %520 = vmatprep.subr.mxu0 0.0
        %521 = vmatpush1.xpose.msra.mxu0 0.0
        %522 = vmatprep.subr.mxu0 0.0
        %523 = vmatpush1.xpose.msra.mxu0 0.0
        %524 = vmatprep.subr.mxu0 0.0
        %525 = vmatpush1.xpose.msra.mxu0 0.0
        %526 = vmatprep.subr.mxu0 0.0
        %527 = vmatpush1.xpose.msra.mxu0 0.0
        %528 = vmatprep.subr.mxu0 0.0
        %529 = vmatpush1.xpose.msra.mxu0 0.0
        %530 = vmatprep.subr.mxu0 0.0
        %531 = vmatpush1.xpose.msra.mxu0 0.0
        %532 = vmatprep.subr.mxu0 0.0
        %533 = vmatpush1.xpose.msra.mxu0 0.0
        %534 = vmatprep.subr.mxu0 0.0
        %535 = vmatpush1.xpose.msra.mxu0 0.0
        %536 = vmatprep.subr.mxu0 0.0
        %537 = vmatpush1.xpose.msra.mxu0 0.0
        %538 = vmatprep.subr.mxu0 0.0
        %539 = vmatpush1.xpose.msra.mxu0 0.0
        %540 = vmatprep.subr.mxu0 0.0
        %541 = vmatpush1.xpose.msra.mxu0 0.0
        %542 = vmatprep.subr.mxu0 0.0
        %543 = vmatpush1.xpose.msra.mxu0 0.0
        %544 = vmatprep.subr.mxu0 0.0
        %545 = vmatpush1.xpose.msra.mxu0 0.0
        %v546 = vand.u32 %v205, 4294901760
        %v547 = vsub.f32 %v205, %v546
        %v548 = vand.u32 %v547, 4294901760
        %549 = vmatprep.mubr.f32.mxu0 %v548
        %v550 = vand.u32 %v201, 4294901760
        %v551 = vsub.f32 %v201, %v550
        %v552 = vand.u32 %v551, 4294901760
        %553 = vmatmul.mubr.f32.gmra.mrb[0].mxu0 %v552
        %v554 = vpop.f32.mrb[0].mxu0
        %v555 = vadd.f32 %v477, %v554
        %v556 = vpop.f32.mrb[0].mxu0
        %557 = vdwg.mxu0
        %v558 = vand.u32 %v188, 4294901760
        %v559 = vsub.f32 %v188, %v558
        %v560 = vand.u32 %v559, 4294901760
        %561 = vmatprep.subr.mxu0 %v560
        %v562 = vand.u32 %v187, 4294901760
        %v563 = vsub.f32 %v187, %v562
        %v564 = vand.u32 %v563, 4294901760
        %565 = vmatpush1.xpose.msra.mxu0 %v564
        %566 = vmatprep.subr.mxu0 0.0
        %567 = vmatpush1.xpose.msra.mxu0 0.0
        %568 = vmatprep.subr.mxu0 0.0
        %569 = vmatpush1.xpose.msra.mxu0 0.0
        %570 = vmatprep.subr.mxu0 0.0
        %571 = vmatpush1.xpose.msra.mxu0 0.0
        %572 = vmatprep.subr.mxu0 0.0
        %573 = vmatpush1.xpose.msra.mxu0 0.0
        %574 = vmatprep.subr.mxu0 0.0
        %575 = vmatpush1.xpose.msra.mxu0 0.0
        %576 = vmatprep.subr.mxu0 0.0
        %577 = vmatpush1.xpose.msra.mxu0 0.0
        %578 = vmatprep.subr.mxu0 0.0
        %579 = vmatpush1.xpose.msra.mxu0 0.0
        %580 = vmatprep.subr.mxu0 0.0
        %581 = vmatpush1.xpose.msra.mxu0 0.0
        %582 = vmatprep.subr.mxu0 0.0
        %583 = vmatpush1.xpose.msra.mxu0 0.0
        %584 = vmatprep.subr.mxu0 0.0
        %585 = vmatpush1.xpose.msra.mxu0 0.0
        %586 = vmatprep.subr.mxu0 0.0
        %587 = vmatpush1.xpose.msra.mxu0 0.0
        %588 = vmatprep.subr.mxu0 0.0
        %589 = vmatpush1.xpose.msra.mxu0 0.0
        %590 = vmatprep.subr.mxu0 0.0
        %591 = vmatpush1.xpose.msra.mxu0 0.0
        %592 = vmatprep.subr.mxu0 0.0
        %593 = vmatpush1.xpose.msra.mxu0 0.0
        %594 = vmatprep.subr.mxu0 0.0
        %595 = vmatpush1.xpose.msra.mxu0 0.0
        %596 = vmatprep.subr.mxu0 0.0
        %597 = vmatpush1.xpose.msra.mxu0 0.0
        %598 = vmatprep.subr.mxu0 0.0
        %599 = vmatpush1.xpose.msra.mxu0 0.0
        %600 = vmatprep.subr.mxu0 0.0
        %601 = vmatpush1.xpose.msra.mxu0 0.0
        %602 = vmatprep.subr.mxu0 0.0
        %603 = vmatpush1.xpose.msra.mxu0 0.0
        %604 = vmatprep.subr.mxu0 0.0
        %605 = vmatpush1.xpose.msra.mxu0 0.0
        %606 = vmatprep.subr.mxu0 0.0
        %607 = vmatpush1.xpose.msra.mxu0 0.0
        %608 = vmatprep.subr.mxu0 0.0
        %609 = vmatpush1.xpose.msra.mxu0 0.0
        %610 = vmatprep.subr.mxu0 0.0
        %611 = vmatpush1.xpose.msra.mxu0 0.0
        %612 = vmatprep.subr.mxu0 0.0
        %613 = vmatpush1.xpose.msra.mxu0 0.0
        %614 = vmatprep.subr.mxu0 0.0
        %615 = vmatpush1.xpose.msra.mxu0 0.0
        %616 = vmatprep.subr.mxu0 0.0
        %617 = vmatpush1.xpose.msra.mxu0 0.0
        %618 = vmatprep.subr.mxu0 0.0
        %619 = vmatpush1.xpose.msra.mxu0 0.0
        %620 = vmatprep.subr.mxu0 0.0
        %621 = vmatpush1.xpose.msra.mxu0 0.0
        %622 = vmatprep.subr.mxu0 0.0
        %623 = vmatpush1.xpose.msra.mxu0 0.0
        %624 = vmatprep.subr.mxu0 0.0
        %625 = vmatpush1.xpose.msra.mxu0 0.0
        %626 = vmatprep.subr.mxu0 0.0
        %627 = vmatpush1.xpose.msra.mxu0 0.0
        %v628 = vand.u32 %v205, 4294901760
        %629 = vmatprep.mubr.f32.mxu0 %v628
        %v630 = vand.u32 %v201, 4294901760
        %631 = vmatmul.mubr.f32.gmra.mrb[0].mxu0 %v630
        %v632 = vpop.f32.mrb[0].mxu0
        %v633 = vadd.f32 %v555, %v632
        %v634 = vpop.f32.mrb[0].mxu0
        %635 = vdwg.mxu0
        %v636 = vand.u32 %v188, 4294901760
        %637 = vmatprep.subr.mxu0 %v636
        %v638 = vand.u32 %v187, 4294901760
        %639 = vmatpush1.xpose.msra.mxu0 %v638
        %640 = vmatprep.subr.mxu0 0.0
        %641 = vmatpush1.xpose.msra.mxu0 0.0
        %642 = vmatprep.subr.mxu0 0.0
        %643 = vmatpush1.xpose.msra.mxu0 0.0
        %644 = vmatprep.subr.mxu0 0.0
        %645 = vmatpush1.xpose.msra.mxu0 0.0
        %646 = vmatprep.subr.mxu0 0.0
        %647 = vmatpush1.xpose.msra.mxu0 0.0
        %648 = vmatprep.subr.mxu0 0.0
        %649 = vmatpush1.xpose.msra.mxu0 0.0
        %650 = vmatprep.subr.mxu0 0.0
        %651 = vmatpush1.xpose.msra.mxu0 0.0
        %652 = vmatprep.subr.mxu0 0.0
        %653 = vmatpush1.xpose.msra.mxu0 0.0
        %654 = vmatprep.subr.mxu0 0.0
        %655 = vmatpush1.xpose.msra.mxu0 0.0
        %656 = vmatprep.subr.mxu0 0.0
        %657 = vmatpush1.xpose.msra.mxu0 0.0
        %658 = vmatprep.subr.mxu0 0.0
        %659 = vmatpush1.xpose.msra.mxu0 0.0
        %660 = vmatprep.subr.mxu0 0.0
        %661 = vmatpush1.xpose.msra.mxu0 0.0
        %662 = vmatprep.subr.mxu0 0.0
        %663 = vmatpush1.xpose.msra.mxu0 0.0
        %664 = vmatprep.subr.mxu0 0.0
        %665 = vmatpush1.xpose.msra.mxu0 0.0
        %666 = vmatprep.subr.mxu0 0.0
        %667 = vmatpush1.xpose.msra.mxu0 0.0
        %668 = vmatprep.subr.mxu0 0.0
        %669 = vmatpush1.xpose.msra.mxu0 0.0
        %670 = vmatprep.subr.mxu0 0.0
        %671 = vmatpush1.xpose.msra.mxu0 0.0
        %672 = vmatprep.subr.mxu0 0.0
        %673 = vmatpush1.xpose.msra.mxu0 0.0
        %674 = vmatprep.subr.mxu0 0.0
        %675 = vmatpush1.xpose.msra.mxu0 0.0
        %676 = vmatprep.subr.mxu0 0.0
        %677 = vmatpush1.xpose.msra.mxu0 0.0
        %678 = vmatprep.subr.mxu0 0.0
        %679 = vmatpush1.xpose.msra.mxu0 0.0
        %680 = vmatprep.subr.mxu0 0.0
        %681 = vmatpush1.xpose.msra.mxu0 0.0
        %682 = vmatprep.subr.mxu0 0.0
        %683 = vmatpush1.xpose.msra.mxu0 0.0
        %684 = vmatprep.subr.mxu0 0.0
        %685 = vmatpush1.xpose.msra.mxu0 0.0
        %686 = vmatprep.subr.mxu0 0.0
        %687 = vmatpush1.xpose.msra.mxu0 0.0
        %688 = vmatprep.subr.mxu0 0.0
        %689 = vmatpush1.xpose.msra.mxu0 0.0
        %690 = vmatprep.subr.mxu0 0.0
        %691 = vmatpush1.xpose.msra.mxu0 0.0
        %692 = vmatprep.subr.mxu0 0.0
        %693 = vmatpush1.xpose.msra.mxu0 0.0
        %694 = vmatprep.subr.mxu0 0.0
        %695 = vmatpush1.xpose.msra.mxu0 0.0
        %696 = vmatprep.subr.mxu0 0.0
        %697 = vmatpush1.xpose.msra.mxu0 0.0
        %698 = vmatprep.subr.mxu0 0.0
        %699 = vmatpush1.xpose.msra.mxu0 0.0
        %700 = vmatprep.subr.mxu0 0.0
        %701 = vmatpush1.xpose.msra.mxu0 0.0
        %v702 = vand.u32 %v205, 4294901760
        %703 = vmatprep.mubr.f32.mxu0 %v702
        %v704 = vand.u32 %v201, 4294901760
        %705 = vmatmul.mubr.f32.gmra.mrb[0].mxu0 %v704
        %v706 = vpop.f32.mrb[0].mxu0
        %v707 = vadd.f32 %v633, %v706
        %v708 = vpop.f32.mrb[0].mxu0
        %709 = vdwg.mxu0
        %v710 = vand.u32 %v190, 4294901760
        %711 = vmatprep.subr.mxu0 %v710
        %v712 = vand.u32 %v189, 4294901760
        %713 = vmatpush1.xpose.msra.mxu0 %v712
        %714 = vmatprep.subr.mxu0 0.0
        %715 = vmatpush1.xpose.msra.mxu0 0.0
        %716 = vmatprep.subr.mxu0 0.0
        %717 = vmatpush1.xpose.msra.mxu0 0.0
        %718 = vmatprep.subr.mxu0 0.0
        %719 = vmatpush1.xpose.msra.mxu0 0.0
        %720 = vmatprep.subr.mxu0 0.0
        %721 = vmatpush1.xpose.msra.mxu0 0.0
        %722 = vmatprep.subr.mxu0 0.0
        %723 = vmatpush1.xpose.msra.mxu0 0.0
        %724 = vmatprep.subr.mxu0 0.0
        %725 = vmatpush1.xpose.msra.mxu0 0.0
        %726 = vmatprep.subr.mxu0 0.0
        %727 = vmatpush1.xpose.msra.mxu0 0.0
        %728 = vmatprep.subr.mxu0 0.0
        %729 = vmatpush1.xpose.msra.mxu0 0.0
        %730 = vmatprep.subr.mxu0 0.0
        %731 = vmatpush1.xpose.msra.mxu0 0.0
        %732 = vmatprep.subr.mxu0 0.0
        %733 = vmatpush1.xpose.msra.mxu0 0.0
        %734 = vmatprep.subr.mxu0 0.0
        %735 = vmatpush1.xpose.msra.mxu0 0.0
        %736 = vmatprep.subr.mxu0 0.0
        %737 = vmatpush1.xpose.msra.mxu0 0.0
        %738 = vmatprep.subr.mxu0 0.0
        %739 = vmatpush1.xpose.msra.mxu0 0.0
        %740 = vmatprep.subr.mxu0 0.0
        %741 = vmatpush1.xpose.msra.mxu0 0.0
        %742 = vmatprep.subr.mxu0 0.0
        %743 = vmatpush1.xpose.msra.mxu0 0.0
        %744 = vmatprep.subr.mxu0 0.0
        %745 = vmatpush1.xpose.msra.mxu0 0.0
        %746 = vmatprep.subr.mxu0 0.0
        %747 = vmatpush1.xpose.msra.mxu0 0.0
        %748 = vmatprep.subr.mxu0 0.0
        %749 = vmatpush1.xpose.msra.mxu0 0.0
        %750 = vmatprep.subr.mxu0 0.0
        %751 = vmatpush1.xpose.msra.mxu0 0.0
        %752 = vmatprep.subr.mxu0 0.0
        %753 = vmatpush1.xpose.msra.mxu0 0.0
        %754 = vmatprep.subr.mxu0 0.0
        %755 = vmatpush1.xpose.msra.mxu0 0.0
        %756 = vmatprep.subr.mxu0 0.0
        %757 = vmatpush1.xpose.msra.mxu0 0.0
        %758 = vmatprep.subr.mxu0 0.0
        %759 = vmatpush1.xpose.msra.mxu0 0.0
        %760 = vmatprep.subr.mxu0 0.0
        %761 = vmatpush1.xpose.msra.mxu0 0.0
        %762 = vmatprep.subr.mxu0 0.0
        %763 = vmatpush1.xpose.msra.mxu0 0.0
        %764 = vmatprep.subr.mxu0 0.0
        %765 = vmatpush1.xpose.msra.mxu0 0.0
        %766 = vmatprep.subr.mxu0 0.0
        %767 = vmatpush1.xpose.msra.mxu0 0.0
        %768 = vmatprep.subr.mxu0 0.0
        %769 = vmatpush1.xpose.msra.mxu0 0.0
        %770 = vmatprep.subr.mxu0 0.0
        %771 = vmatpush1.xpose.msra.mxu0 0.0
        %772 = vmatprep.subr.mxu0 0.0
        %773 = vmatpush1.xpose.msra.mxu0 0.0
        %774 = vmatprep.subr.mxu0 0.0
        %775 = vmatpush1.xpose.msra.mxu0 0.0
        %v776 = vand.u32 %v213, 4294901760
        %v777 = vsub.f32 %v213, %v776
        %v778 = vand.u32 %v777, 4294901760
        %v779 = vsub.f32 %v777, %v778
        %v780 = vand.u32 %v779, 4294901760
        %781 = vmatprep.mubr.f32.mxu0 %v780
        %v782 = vand.u32 %v209, 4294901760
        %v783 = vsub.f32 %v209, %v782
        %v784 = vand.u32 %v783, 4294901760
        %v785 = vsub.f32 %v783, %v784
        %v786 = vand.u32 %v785, 4294901760
        %787 = vmatmul.mubr.f32.gmra.mrb[0].mxu0 %v786
        %v788 = vpop.f32.mrb[0].mxu0
        %v789 = vadd.f32 %v707, %v788
        %v790 = vpop.f32.mrb[0].mxu0
        %791 = vdwg.mxu0
        %v792 = vand.u32 %v190, 4294901760
        %v793 = vsub.f32 %v190, %v792
        %v794 = vand.u32 %v793, 4294901760
        %v795 = vsub.f32 %v793, %v794
        %v796 = vand.u32 %v795, 4294901760
        %797 = vmatprep.subr.mxu0 %v796
        %v798 = vand.u32 %v189, 4294901760
        %v799 = vsub.f32 %v189, %v798
        %v800 = vand.u32 %v799, 4294901760
        %v801 = vsub.f32 %v799, %v800
        %v802 = vand.u32 %v801, 4294901760
        %803 = vmatpush1.xpose.msra.mxu0 %v802
        %804 = vmatprep.subr.mxu0 0.0
        %805 = vmatpush1.xpose.msra.mxu0 0.0
        %806 = vmatprep.subr.mxu0 0.0
        %807 = vmatpush1.xpose.msra.mxu0 0.0
        %808 = vmatprep.subr.mxu0 0.0
        %809 = vmatpush1.xpose.msra.mxu0 0.0
        %810 = vmatprep.subr.mxu0 0.0
        %811 = vmatpush1.xpose.msra.mxu0 0.0
        %812 = vmatprep.subr.mxu0 0.0
        %813 = vmatpush1.xpose.msra.mxu0 0.0
        %814 = vmatprep.subr.mxu0 0.0
        %815 = vmatpush1.xpose.msra.mxu0 0.0
        %816 = vmatprep.subr.mxu0 0.0
        %817 = vmatpush1.xpose.msra.mxu0 0.0
        %818 = vmatprep.subr.mxu0 0.0
        %819 = vmatpush1.xpose.msra.mxu0 0.0
        %820 = vmatprep.subr.mxu0 0.0
        %821 = vmatpush1.xpose.msra.mxu0 0.0
        %822 = vmatprep.subr.mxu0 0.0
        %823 = vmatpush1.xpose.msra.mxu0 0.0
        %824 = vmatprep.subr.mxu0 0.0
        %825 = vmatpush1.xpose.msra.mxu0 0.0
        %826 = vmatprep.subr.mxu0 0.0
        %827 = vmatpush1.xpose.msra.mxu0 0.0
        %828 = vmatprep.subr.mxu0 0.0
        %829 = vmatpush1.xpose.msra.mxu0 0.0
        %830 = vmatprep.subr.mxu0 0.0
        %831 = vmatpush1.xpose.msra.mxu0 0.0
        %832 = vmatprep.subr.mxu0 0.0
        %833 = vmatpush1.xpose.msra.mxu0 0.0
        %834 = vmatprep.subr.mxu0 0.0
        %835 = vmatpush1.xpose.msra.mxu0 0.0
        %836 = vmatprep.subr.mxu0 0.0
        %837 = vmatpush1.xpose.msra.mxu0 0.0
        %838 = vmatprep.subr.mxu0 0.0
        %839 = vmatpush1.xpose.msra.mxu0 0.0
        %840 = vmatprep.subr.mxu0 0.0
        %841 = vmatpush1.xpose.msra.mxu0 0.0
        %842 = vmatprep.subr.mxu0 0.0
        %843 = vmatpush1.xpose.msra.mxu0 0.0
        %844 = vmatprep.subr.mxu0 0.0
        %845 = vmatpush1.xpose.msra.mxu0 0.0
        %846 = vmatprep.subr.mxu0 0.0
        %847 = vmatpush1.xpose.msra.mxu0 0.0
        %848 = vmatprep.subr.mxu0 0.0
        %849 = vmatpush1.xpose.msra.mxu0 0.0
        %850 = vmatprep.subr.mxu0 0.0
        %851 = vmatpush1.xpose.msra.mxu0 0.0
        %852 = vmatprep.subr.mxu0 0.0
        %853 = vmatpush1.xpose.msra.mxu0 0.0
        %854 = vmatprep.subr.mxu0 0.0
        %855 = vmatpush1.xpose.msra.mxu0 0.0
        %856 = vmatprep.subr.mxu0 0.0
        %857 = vmatpush1.xpose.msra.mxu0 0.0
        %858 = vmatprep.subr.mxu0 0.0
        %859 = vmatpush1.xpose.msra.mxu0 0.0
        %860 = vmatprep.subr.mxu0 0.0
        %861 = vmatpush1.xpose.msra.mxu0 0.0
        %862 = vmatprep.subr.mxu0 0.0
        %863 = vmatpush1.xpose.msra.mxu0 0.0
        %864 = vmatprep.subr.mxu0 0.0
        %865 = vmatpush1.xpose.msra.mxu0 0.0
        %v866 = vand.u32 %v213, 4294901760
        %867 = vmatprep.mubr.f32.mxu0 %v866
        %v868 = vand.u32 %v209, 4294901760
        %869 = vmatmul.mubr.f32.gmra.mrb[0].mxu0 %v868
        %v870 = vpop.f32.mrb[0].mxu0
        %v871 = vadd.f32 %v789, %v870
        %v872 = vpop.f32.mrb[0].mxu0
        %873 = vdwg.mxu0
        %v874 = vand.u32 %v190, 4294901760
        %v875 = vsub.f32 %v190, %v874
        %876 = vmatprep.subr.mxu0 %v875
        %v877 = vand.u32 %v189, 4294901760
        %v878 = vsub.f32 %v189, %v877
        %879 = vmatpush1.xpose.msra.mxu0 %v878
        %880 = vmatprep.subr.mxu0 0.0
        %881 = vmatpush1.xpose.msra.mxu0 0.0
        %882 = vmatprep.subr.mxu0 0.0
        %883 = vmatpush1.xpose.msra.mxu0 0.0
        %884 = vmatprep.subr.mxu0 0.0
        %885 = vmatpush1.xpose.msra.mxu0 0.0
        %886 = vmatprep.subr.mxu0 0.0
        %887 = vmatpush1.xpose.msra.mxu0 0.0
        %888 = vmatprep.subr.mxu0 0.0
        %889 = vmatpush1.xpose.msra.mxu0 0.0
        %890 = vmatprep.subr.mxu0 0.0
        %891 = vmatpush1.xpose.msra.mxu0 0.0
        %892 = vmatprep.subr.mxu0 0.0
        %893 = vmatpush1.xpose.msra.mxu0 0.0
        %894 = vmatprep.subr.mxu0 0.0
        %895 = vmatpush1.xpose.msra.mxu0 0.0
        %896 = vmatprep.subr.mxu0 0.0
        %897 = vmatpush1.xpose.msra.mxu0 0.0
        %898 = vmatprep.subr.mxu0 0.0
        %899 = vmatpush1.xpose.msra.mxu0 0.0
        %900 = vmatprep.subr.mxu0 0.0
        %901 = vmatpush1.xpose.msra.mxu0 0.0
        %902 = vmatprep.subr.mxu0 0.0
        %903 = vmatpush1.xpose.msra.mxu0 0.0
        %904 = vmatprep.subr.mxu0 0.0
        %905 = vmatpush1.xpose.msra.mxu0 0.0
        %906 = vmatprep.subr.mxu0 0.0
        %907 = vmatpush1.xpose.msra.mxu0 0.0
        %908 = vmatprep.subr.mxu0 0.0
        %909 = vmatpush1.xpose.msra.mxu0 0.0
        %910 = vmatprep.subr.mxu0 0.0
        %911 = vmatpush1.xpose.msra.mxu0 0.0
        %912 = vmatprep.subr.mxu0 0.0
        %913 = vmatpush1.xpose.msra.mxu0 0.0
        %914 = vmatprep.subr.mxu0 0.0
        %915 = vmatpush1.xpose.msra.mxu0 0.0
        %916 = vmatprep.subr.mxu0 0.0
        %917 = vmatpush1.xpose.msra.mxu0 0.0
        %918 = vmatprep.subr.mxu0 0.0
        %919 = vmatpush1.xpose.msra.mxu0 0.0
        %920 = vmatprep.subr.mxu0 0.0
        %921 = vmatpush1.xpose.msra.mxu0 0.0
        %922 = vmatprep.subr.mxu0 0.0
        %923 = vmatpush1.xpose.msra.mxu0 0.0
        %924 = vmatprep.subr.mxu0 0.0
        %925 = vmatpush1.xpose.msra.mxu0 0.0
        %926 = vmatprep.subr.mxu0 0.0
        %927 = vmatpush1.xpose.msra.mxu0 0.0
        %928 = vmatprep.subr.mxu0 0.0
        %929 = vmatpush1.xpose.msra.mxu0 0.0
        %930 = vmatprep.subr.mxu0 0.0
        %931 = vmatpush1.xpose.msra.mxu0 0.0
        %932 = vmatprep.subr.mxu0 0.0
        %933 = vmatpush1.xpose.msra.mxu0 0.0
        %934 = vmatprep.subr.mxu0 0.0
        %935 = vmatpush1.xpose.msra.mxu0 0.0
        %936 = vmatprep.subr.mxu0 0.0
        %937 = vmatpush1.xpose.msra.mxu0 0.0
        %938 = vmatprep.subr.mxu0 0.0
        %939 = vmatpush1.xpose.msra.mxu0 0.0
        %940 = vmatprep.subr.mxu0 0.0
        %941 = vmatpush1.xpose.msra.mxu0 0.0
        %v942 = vand.u32 %v213, 4294901760
        %v943 = vsub.f32 %v213, %v942
        %944 = vmatprep.mubr.f32.mxu0 %v943
        %v945 = vand.u32 %v209, 4294901760
        %v946 = vsub.f32 %v209, %v945
        %947 = vmatmul.mubr.f32.gmra.mrb[0].mxu0 %v946
        %v948 = vpop.f32.mrb[0].mxu0
        %v949 = vadd.f32 %v871, %v948
        %v950 = vpop.f32.mrb[0].mxu0
        %951 = vdwg.mxu0
        %v952 = vand.u32 %v190, 4294901760
        %953 = vmatprep.subr.mxu0 %v952
        %v954 = vand.u32 %v189, 4294901760
        %955 = vmatpush1.xpose.msra.mxu0 %v954
        %956 = vmatprep.subr.mxu0 0.0
        %957 = vmatpush1.xpose.msra.mxu0 0.0
        %958 = vmatprep.subr.mxu0 0.0
        %959 = vmatpush1.xpose.msra.mxu0 0.0
        %960 = vmatprep.subr.mxu0 0.0
        %961 = vmatpush1.xpose.msra.mxu0 0.0
        %962 = vmatprep.subr.mxu0 0.0
        %963 = vmatpush1.xpose.msra.mxu0 0.0
        %964 = vmatprep.subr.mxu0 0.0
        %965 = vmatpush1.xpose.msra.mxu0 0.0
        %966 = vmatprep.subr.mxu0 0.0
        %967 = vmatpush1.xpose.msra.mxu0 0.0
        %968 = vmatprep.subr.mxu0 0.0
        %969 = vmatpush1.xpose.msra.mxu0 0.0
        %970 = vmatprep.subr.mxu0 0.0
        %971 = vmatpush1.xpose.msra.mxu0 0.0
        %972 = vmatprep.subr.mxu0 0.0
        %973 = vmatpush1.xpose.msra.mxu0 0.0
        %974 = vmatprep.subr.mxu0 0.0
        %975 = vmatpush1.xpose.msra.mxu0 0.0
        %976 = vmatprep.subr.mxu0 0.0
        %977 = vmatpush1.xpose.msra.mxu0 0.0
        %978 = vmatprep.subr.mxu0 0.0
        %979 = vmatpush1.xpose.msra.mxu0 0.0
        %980 = vmatprep.subr.mxu0 0.0
        %981 = vmatpush1.xpose.msra.mxu0 0.0
        %982 = vmatprep.subr.mxu0 0.0
        %983 = vmatpush1.xpose.msra.mxu0 0.0
        %984 = vmatprep.subr.mxu0 0.0
        %985 = vmatpush1.xpose.msra.mxu0 0.0
        %986 = vmatprep.subr.mxu0 0.0
        %987 = vmatpush1.xpose.msra.mxu0 0.0
        %988 = vmatprep.subr.mxu0 0.0
        %989 = vmatpush1.xpose.msra.mxu0 0.0
        %990 = vmatprep.subr.mxu0 0.0
        %991 = vmatpush1.xpose.msra.mxu0 0.0
        %992 = vmatprep.subr.mxu0 0.0
        %993 = vmatpush1.xpose.msra.mxu0 0.0
        %994 = vmatprep.subr.mxu0 0.0
        %995 = vmatpush1.xpose.msra.mxu0 0.0
        %996 = vmatprep.subr.mxu0 0.0
        %997 = vmatpush1.xpose.msra.mxu0 0.0
        %998 = vmatprep.subr.mxu0 0.0
        %999 = vmatpush1.xpose.msra.mxu0 0.0
        %1000 = vmatprep.subr.mxu0 0.0
        %1001 = vmatpush1.xpose.msra.mxu0 0.0
        %1002 = vmatprep.subr.mxu0 0.0
        %1003 = vmatpush1.xpose.msra.mxu0 0.0
        %1004 = vmatprep.subr.mxu0 0.0
        %1005 = vmatpush1.xpose.msra.mxu0 0.0
        %1006 = vmatprep.subr.mxu0 0.0
        %1007 = vmatpush1.xpose.msra.mxu0 0.0
        %1008 = vmatprep.subr.mxu0 0.0
        %1009 = vmatpush1.xpose.msra.mxu0 0.0
        %1010 = vmatprep.subr.mxu0 0.0
        %1011 = vmatpush1.xpose.msra.mxu0 0.0
        %1012 = vmatprep.subr.mxu0 0.0
        %1013 = vmatpush1.xpose.msra.mxu0 0.0
        %1014 = vmatprep.subr.mxu0 0.0
        %1015 = vmatpush1.xpose.msra.mxu0 0.0
        %1016 = vmatprep.subr.mxu0 0.0
        %1017 = vmatpush1.xpose.msra.mxu0 0.0
        %v1018 = vand.u32 %v213, 4294901760
        %v1019 = vsub.f32 %v213, %v1018
        %v1020 = vand.u32 %v1019, 4294901760
        %1021 = vmatprep.mubr.f32.mxu0 %v1020
        %v1022 = vand.u32 %v209, 4294901760
        %v1023 = vsub.f32 %v209, %v1022
        %v1024 = vand.u32 %v1023, 4294901760
        %1025 = vmatmul.mubr.f32.gmra.mrb[0].mxu0 %v1024
        %v1026 = vpop.f32.mrb[0].mxu0
        %v1027 = vadd.f32 %v949, %v1026
        %v1028 = vpop.f32.mrb[0].mxu0
        %1029 = vdwg.mxu0
        %v1030 = vand.u32 %v190, 4294901760
        %v1031 = vsub.f32 %v190, %v1030
        %v1032 = vand.u32 %v1031, 4294901760
        %1033 = vmatprep.subr.mxu0 %v1032
        %v1034 = vand.u32 %v189, 4294901760
        %v1035 = vsub.f32 %v189, %v1034
        %v1036 = vand.u32 %v1035, 4294901760
        %1037 = vmatpush1.xpose.msra.mxu0 %v1036
        %1038 = vmatprep.subr.mxu0 0.0
        %1039 = vmatpush1.xpose.msra.mxu0 0.0
        %1040 = vmatprep.subr.mxu0 0.0
        %1041 = vmatpush1.xpose.msra.mxu0 0.0
        %1042 = vmatprep.subr.mxu0 0.0
        %1043 = vmatpush1.xpose.msra.mxu0 0.0
        %1044 = vmatprep.subr.mxu0 0.0
        %1045 = vmatpush1.xpose.msra.mxu0 0.0
        %1046 = vmatprep.subr.mxu0 0.0
        %1047 = vmatpush1.xpose.msra.mxu0 0.0
        %1048 = vmatprep.subr.mxu0 0.0
        %1049 = vmatpush1.xpose.msra.mxu0 0.0
        %1050 = vmatprep.subr.mxu0 0.0
        %1051 = vmatpush1.xpose.msra.mxu0 0.0
        %1052 = vmatprep.subr.mxu0 0.0
        %1053 = vmatpush1.xpose.msra.mxu0 0.0
        %1054 = vmatprep.subr.mxu0 0.0
        %1055 = vmatpush1.xpose.msra.mxu0 0.0
        %1056 = vmatprep.subr.mxu0 0.0
        %1057 = vmatpush1.xpose.msra.mxu0 0.0
        %1058 = vmatprep.subr.mxu0 0.0
        %1059 = vmatpush1.xpose.msra.mxu0 0.0
        %1060 = vmatprep.subr.mxu0 0.0
        %1061 = vmatpush1.xpose.msra.mxu0 0.0
        %1062 = vmatprep.subr.mxu0 0.0
        %1063 = vmatpush1.xpose.msra.mxu0 0.0
        %1064 = vmatprep.subr.mxu0 0.0
        %1065 = vmatpush1.xpose.msra.mxu0 0.0
        %1066 = vmatprep.subr.mxu0 0.0
        %1067 = vmatpush1.xpose.msra.mxu0 0.0
        %1068 = vmatprep.subr.mxu0 0.0
        %1069 = vmatpush1.xpose.msra.mxu0 0.0
        %1070 = vmatprep.subr.mxu0 0.0
        %1071 = vmatpush1.xpose.msra.mxu0 0.0
        %1072 = vmatprep.subr.mxu0 0.0
        %1073 = vmatpush1.xpose.msra.mxu0 0.0
        %1074 = vmatprep.subr.mxu0 0.0
        %1075 = vmatpush1.xpose.msra.mxu0 0.0
        %1076 = vmatprep.subr.mxu0 0.0
        %1077 = vmatpush1.xpose.msra.mxu0 0.0
        %1078 = vmatprep.subr.mxu0 0.0
        %1079 = vmatpush1.xpose.msra.mxu0 0.0
        %1080 = vmatprep.subr.mxu0 0.0
        %1081 = vmatpush1.xpose.msra.mxu0 0.0
        %1082 = vmatprep.subr.mxu0 0.0
        %1083 = vmatpush1.xpose.msra.mxu0 0.0
        %1084 = vmatprep.subr.mxu0 0.0
        %1085 = vmatpush1.xpose.msra.mxu0 0.0
        %1086 = vmatprep.subr.mxu0 0.0
        %1087 = vmatpush1.xpose.msra.mxu0 0.0
        %1088 = vmatprep.subr.mxu0 0.0
        %1089 = vmatpush1.xpose.msra.mxu0 0.0
        %1090 = vmatprep.subr.mxu0 0.0
        %1091 = vmatpush1.xpose.msra.mxu0 0.0
        %1092 = vmatprep.subr.mxu0 0.0
        %1093 = vmatpush1.xpose.msra.mxu0 0.0
        %1094 = vmatprep.subr.mxu0 0.0
        %1095 = vmatpush1.xpose.msra.mxu0 0.0
        %1096 = vmatprep.subr.mxu0 0.0
        %1097 = vmatpush1.xpose.msra.mxu0 0.0
        %1098 = vmatprep.subr.mxu0 0.0
        %1099 = vmatpush1.xpose.msra.mxu0 0.0
        %v1100 = vand.u32 %v213, 4294901760
        %1101 = vmatprep.mubr.f32.mxu0 %v1100
        %v1102 = vand.u32 %v209, 4294901760
        %1103 = vmatmul.mubr.f32.gmra.mrb[0].mxu0 %v1102
        %v1104 = vpop.f32.mrb[0].mxu0
        %v1105 = vadd.f32 %v1027, %v1104
        %v1106 = vpop.f32.mrb[0].mxu0
        %1107 = vdwg.mxu0
        %v1108 = vand.u32 %v190, 4294901760
        %1109 = vmatprep.subr.mxu0 %v1108
        %v1110 = vand.u32 %v189, 4294901760
        %1111 = vmatpush1.xpose.msra.mxu0 %v1110
        %1112 = vmatprep.subr.mxu0 0.0
        %1113 = vmatpush1.xpose.msra.mxu0 0.0
        %1114 = vmatprep.subr.mxu0 0.0
        %1115 = vmatpush1.xpose.msra.mxu0 0.0
        %1116 = vmatprep.subr.mxu0 0.0
        %1117 = vmatpush1.xpose.msra.mxu0 0.0
        %1118 = vmatprep.subr.mxu0 0.0
        %1119 = vmatpush1.xpose.msra.mxu0 0.0
        %1120 = vmatprep.subr.mxu0 0.0
        %1121 = vmatpush1.xpose.msra.mxu0 0.0
        %1122 = vmatprep.subr.mxu0 0.0
        %1123 = vmatpush1.xpose.msra.mxu0 0.0
        %1124 = vmatprep.subr.mxu0 0.0
        %1125 = vmatpush1.xpose.msra.mxu0 0.0
        %1126 = vmatprep.subr.mxu0 0.0
        %1127 = vmatpush1.xpose.msra.mxu0 0.0
        %1128 = vmatprep.subr.mxu0 0.0
        %1129 = vmatpush1.xpose.msra.mxu0 0.0
        %1130 = vmatprep.subr.mxu0 0.0
        %1131 = vmatpush1.xpose.msra.mxu0 0.0
        %1132 = vmatprep.subr.mxu0 0.0
        %1133 = vmatpush1.xpose.msra.mxu0 0.0
        %1134 = vmatprep.subr.mxu0 0.0
        %1135 = vmatpush1.xpose.msra.mxu0 0.0
        %1136 = vmatprep.subr.mxu0 0.0
        %1137 = vmatpush1.xpose.msra.mxu0 0.0
        %1138 = vmatprep.subr.mxu0 0.0
        %1139 = vmatpush1.xpose.msra.mxu0 0.0
        %1140 = vmatprep.subr.mxu0 0.0
        %1141 = vmatpush1.xpose.msra.mxu0 0.0
        %1142 = vmatprep.subr.mxu0 0.0
        %1143 = vmatpush1.xpose.msra.mxu0 0.0
        %1144 = vmatprep.subr.mxu0 0.0
        %1145 = vmatpush1.xpose.msra.mxu0 0.0
        %1146 = vmatprep.subr.mxu0 0.0
        %1147 = vmatpush1.xpose.msra.mxu0 0.0
        %1148 = vmatprep.subr.mxu0 0.0
        %1149 = vmatpush1.xpose.msra.mxu0 0.0
        %1150 = vmatprep.subr.mxu0 0.0
        %1151 = vmatpush1.xpose.msra.mxu0 0.0
        %1152 = vmatprep.subr.mxu0 0.0
        %1153 = vmatpush1.xpose.msra.mxu0 0.0
        %1154 = vmatprep.subr.mxu0 0.0
        %1155 = vmatpush1.xpose.msra.mxu0 0.0
        %1156 = vmatprep.subr.mxu0 0.0
        %1157 = vmatpush1.xpose.msra.mxu0 0.0
        %1158 = vmatprep.subr.mxu0 0.0
        %1159 = vmatpush1.xpose.msra.mxu0 0.0
        %1160 = vmatprep.subr.mxu0 0.0
        %1161 = vmatpush1.xpose.msra.mxu0 0.0
        %1162 = vmatprep.subr.mxu0 0.0
        %1163 = vmatpush1.xpose.msra.mxu0 0.0
        %1164 = vmatprep.subr.mxu0 0.0
        %1165 = vmatpush1.xpose.msra.mxu0 0.0
        %1166 = vmatprep.subr.mxu0 0.0
        %1167 = vmatpush1.xpose.msra.mxu0 0.0
        %1168 = vmatprep.subr.mxu0 0.0
        %1169 = vmatpush1.xpose.msra.mxu0 0.0
        %1170 = vmatprep.subr.mxu0 0.0
        %1171 = vmatpush1.xpose.msra.mxu0 0.0
        %1172 = vmatprep.subr.mxu0 0.0
        %1173 = vmatpush1.xpose.msra.mxu0 0.0
        %v1174 = vand.u32 %v213, 4294901760
        %1175 = vmatprep.mubr.f32.mxu0 %v1174
        %v1176 = vand.u32 %v209, 4294901760
        %1177 = vmatmul.mubr.f32.gmra.mrb[0].mxu0 %v1176
        %v1178 = vpop.f32.mrb[0].mxu0
        %v1179 = vadd.f32 %v1105, %v1178
        %v1180 = vpop.f32.mrb[0].mxu0
        %1181 = vdwg.mxu0
        %v1182 = vand.u32 %v192, 4294901760
        %1183 = vmatprep.subr.mxu0 %v1182
        %v1184 = vand.u32 %v191, 4294901760
        %1185 = vmatpush1.xpose.msra.mxu0 %v1184
        %1186 = vmatprep.subr.mxu0 0.0
        %1187 = vmatpush1.xpose.msra.mxu0 0.0
        %1188 = vmatprep.subr.mxu0 0.0
        %1189 = vmatpush1.xpose.msra.mxu0 0.0
        %1190 = vmatprep.subr.mxu0 0.0
        %1191 = vmatpush1.xpose.msra.mxu0 0.0
        %1192 = vmatprep.subr.mxu0 0.0
        %1193 = vmatpush1.xpose.msra.mxu0 0.0
        %1194 = vmatprep.subr.mxu0 0.0
        %1195 = vmatpush1.xpose.msra.mxu0 0.0
        %1196 = vmatprep.subr.mxu0 0.0
        %1197 = vmatpush1.xpose.msra.mxu0 0.0
        %1198 = vmatprep.subr.mxu0 0.0
        %1199 = vmatpush1.xpose.msra.mxu0 0.0
        %1200 = vmatprep.subr.mxu0 0.0
        %1201 = vmatpush1.xpose.msra.mxu0 0.0
        %1202 = vmatprep.subr.mxu0 0.0
        %1203 = vmatpush1.xpose.msra.mxu0 0.0
        %1204 = vmatprep.subr.mxu0 0.0
        %1205 = vmatpush1.xpose.msra.mxu0 0.0
        %1206 = vmatprep.subr.mxu0 0.0
        %1207 = vmatpush1.xpose.msra.mxu0 0.0
        %1208 = vmatprep.subr.mxu0 0.0
        %1209 = vmatpush1.xpose.msra.mxu0 0.0
        %1210 = vmatprep.subr.mxu0 0.0
        %1211 = vmatpush1.xpose.msra.mxu0 0.0
        %1212 = vmatprep.subr.mxu0 0.0
        %1213 = vmatpush1.xpose.msra.mxu0 0.0
        %1214 = vmatprep.subr.mxu0 0.0
        %1215 = vmatpush1.xpose.msra.mxu0 0.0
        %1216 = vmatprep.subr.mxu0 0.0
        %1217 = vmatpush1.xpose.msra.mxu0 0.0
        %1218 = vmatprep.subr.mxu0 0.0
        %1219 = vmatpush1.xpose.msra.mxu0 0.0
        %1220 = vmatprep.subr.mxu0 0.0
        %1221 = vmatpush1.xpose.msra.mxu0 0.0
        %1222 = vmatprep.subr.mxu0 0.0
        %1223 = vmatpush1.xpose.msra.mxu0 0.0
        %1224 = vmatprep.subr.mxu0 0.0
        %1225 = vmatpush1.xpose.msra.mxu0 0.0
        %1226 = vmatprep.subr.mxu0 0.0
        %1227 = vmatpush1.xpose.msra.mxu0 0.0
        %1228 = vmatprep.subr.mxu0 0.0
        %1229 = vmatpush1.xpose.msra.mxu0 0.0
        %1230 = vmatprep.subr.mxu0 0.0
        %1231 = vmatpush1.xpose.msra.mxu0 0.0
        %1232 = vmatprep.subr.mxu0 0.0
        %1233 = vmatpush1.xpose.msra.mxu0 0.0
        %1234 = vmatprep.subr.mxu0 0.0
        %1235 = vmatpush1.xpose.msra.mxu0 0.0
        %1236 = vmatprep.subr.mxu0 0.0
        %1237 = vmatpush1.xpose.msra.mxu0 0.0
        %1238 = vmatprep.subr.mxu0 0.0
        %1239 = vmatpush1.xpose.msra.mxu0 0.0
        %1240 = vmatprep.subr.mxu0 0.0
        %1241 = vmatpush1.xpose.msra.mxu0 0.0
        %1242 = vmatprep.subr.mxu0 0.0
        %1243 = vmatpush1.xpose.msra.mxu0 0.0
        %1244 = vmatprep.subr.mxu0 0.0
        %1245 = vmatpush1.xpose.msra.mxu0 0.0
        %1246 = vmatprep.subr.mxu0 0.0
        %1247 = vmatpush1.xpose.msra.mxu0 0.0
        %v1248 = vand.u32 %v221, 4294901760
        %v1249 = vsub.f32 %v221, %v1248
        %v1250 = vand.u32 %v1249, 4294901760
        %v1251 = vsub.f32 %v1249, %v1250
        %v1252 = vand.u32 %v1251, 4294901760
        %1253 = vmatprep.mubr.f32.mxu0 %v1252
        %v1254 = vand.u32 %v217, 4294901760
        %v1255 = vsub.f32 %v217, %v1254
        %v1256 = vand.u32 %v1255, 4294901760
        %v1257 = vsub.f32 %v1255, %v1256
        %v1258 = vand.u32 %v1257, 4294901760
        %1259 = vmatmul.mubr.f32.gmra.mrb[0].mxu0 %v1258
        %v1260 = vpop.f32.mrb[0].mxu0
        %v1261 = vadd.f32 %v1179, %v1260
        %v1262 = vpop.f32.mrb[0].mxu0
        %1263 = vdwg.mxu0
        %v1264 = vand.u32 %v192, 4294901760
        %v1265 = vsub.f32 %v192, %v1264
        %v1266 = vand.u32 %v1265, 4294901760
        %v1267 = vsub.f32 %v1265, %v1266
        %v1268 = vand.u32 %v1267, 4294901760
        %1269 = vmatprep.subr.mxu0 %v1268
        %v1270 = vand.u32 %v191, 4294901760
        %v1271 = vsub.f32 %v191, %v1270
        %v1272 = vand.u32 %v1271, 4294901760
        %v1273 = vsub.f32 %v1271, %v1272
        %v1274 = vand.u32 %v1273, 4294901760
        %1275 = vmatpush1.xpose.msra.mxu0 %v1274
        %1276 = vmatprep.subr.mxu0 0.0
        %1277 = vmatpush1.xpose.msra.mxu0 0.0
        %1278 = vmatprep.subr.mxu0 0.0
        %1279 = vmatpush1.xpose.msra.mxu0 0.0
        %1280 = vmatprep.subr.mxu0 0.0
        %1281 = vmatpush1.xpose.msra.mxu0 0.0
        %1282 = vmatprep.subr.mxu0 0.0
        %1283 = vmatpush1.xpose.msra.mxu0 0.0
        %1284 = vmatprep.subr.mxu0 0.0
        %1285 = vmatpush1.xpose.msra.mxu0 0.0
        %1286 = vmatprep.subr.mxu0 0.0
        %1287 = vmatpush1.xpose.msra.mxu0 0.0
        %1288 = vmatprep.subr.mxu0 0.0
        %1289 = vmatpush1.xpose.msra.mxu0 0.0
        %1290 = vmatprep.subr.mxu0 0.0
        %1291 = vmatpush1.xpose.msra.mxu0 0.0
        %1292 = vmatprep.subr.mxu0 0.0
        %1293 = vmatpush1.xpose.msra.mxu0 0.0
        %1294 = vmatprep.subr.mxu0 0.0
        %1295 = vmatpush1.xpose.msra.mxu0 0.0
        %1296 = vmatprep.subr.mxu0 0.0
        %1297 = vmatpush1.xpose.msra.mxu0 0.0
        %1298 = vmatprep.subr.mxu0 0.0
        %1299 = vmatpush1.xpose.msra.mxu0 0.0
        %1300 = vmatprep.subr.mxu0 0.0
        %1301 = vmatpush1.xpose.msra.mxu0 0.0
        %1302 = vmatprep.subr.mxu0 0.0
        %1303 = vmatpush1.xpose.msra.mxu0 0.0
        %1304 = vmatprep.subr.mxu0 0.0
        %1305 = vmatpush1.xpose.msra.mxu0 0.0
        %1306 = vmatprep.subr.mxu0 0.0
        %1307 = vmatpush1.xpose.msra.mxu0 0.0
        %1308 = vmatprep.subr.mxu0 0.0
        %1309 = vmatpush1.xpose.msra.mxu0 0.0
        %1310 = vmatprep.subr.mxu0 0.0
        %1311 = vmatpush1.xpose.msra.mxu0 0.0
        %1312 = vmatprep.subr.mxu0 0.0
        %1313 = vmatpush1.xpose.msra.mxu0 0.0
        %1314 = vmatprep.subr.mxu0 0.0
        %1315 = vmatpush1.xpose.msra.mxu0 0.0
        %1316 = vmatprep.subr.mxu0 0.0
        %1317 = vmatpush1.xpose.msra.mxu0 0.0
        %1318 = vmatprep.subr.mxu0 0.0
        %1319 = vmatpush1.xpose.msra.mxu0 0.0
        %1320 = vmatprep.subr.mxu0 0.0
        %1321 = vmatpush1.xpose.msra.mxu0 0.0
        %1322 = vmatprep.subr.mxu0 0.0
        %1323 = vmatpush1.xpose.msra.mxu0 0.0
        %1324 = vmatprep.subr.mxu0 0.0
        %1325 = vmatpush1.xpose.msra.mxu0 0.0
        %1326 = vmatprep.subr.mxu0 0.0
        %1327 = vmatpush1.xpose.msra.mxu0 0.0
        %1328 = vmatprep.subr.mxu0 0.0
        %1329 = vmatpush1.xpose.msra.mxu0 0.0
        %1330 = vmatprep.subr.mxu0 0.0
        %1331 = vmatpush1.xpose.msra.mxu0 0.0
        %1332 = vmatprep.subr.mxu0 0.0
        %1333 = vmatpush1.xpose.msra.mxu0 0.0
        %1334 = vmatprep.subr.mxu0 0.0
        %1335 = vmatpush1.xpose.msra.mxu0 0.0
        %1336 = vmatprep.subr.mxu0 0.0
        %1337 = vmatpush1.xpose.msra.mxu0 0.0
        %v1338 = vand.u32 %v221, 4294901760
        %1339 = vmatprep.mubr.f32.mxu0 %v1338
        %v1340 = vand.u32 %v217, 4294901760
        %1341 = vmatmul.mubr.f32.gmra.mrb[0].mxu0 %v1340
        %v1342 = vpop.f32.mrb[0].mxu0
        %v1343 = vadd.f32 %v1261, %v1342
        %v1344 = vpop.f32.mrb[0].mxu0
        %1345 = vdwg.mxu0
        %v1346 = vand.u32 %v192, 4294901760
        %v1347 = vsub.f32 %v192, %v1346
        %1348 = vmatprep.subr.mxu0 %v1347
        %v1349 = vand.u32 %v191, 4294901760
        %v1350 = vsub.f32 %v191, %v1349
        %1351 = vmatpush1.xpose.msra.mxu0 %v1350
        %1352 = vmatprep.subr.mxu0 0.0
        %1353 = vmatpush1.xpose.msra.mxu0 0.0
        %1354 = vmatprep.subr.mxu0 0.0
        %1355 = vmatpush1.xpose.msra.mxu0 0.0
        %1356 = vmatprep.subr.mxu0 0.0
        %1357 = vmatpush1.xpose.msra.mxu0 0.0
        %1358 = vmatprep.subr.mxu0 0.0
        %1359 = vmatpush1.xpose.msra.mxu0 0.0
        %1360 = vmatprep.subr.mxu0 0.0
        %1361 = vmatpush1.xpose.msra.mxu0 0.0
        %1362 = vmatprep.subr.mxu0 0.0
        %1363 = vmatpush1.xpose.msra.mxu0 0.0
        %1364 = vmatprep.subr.mxu0 0.0
        %1365 = vmatpush1.xpose.msra.mxu0 0.0
        %1366 = vmatprep.subr.mxu0 0.0
        %1367 = vmatpush1.xpose.msra.mxu0 0.0
        %1368 = vmatprep.subr.mxu0 0.0
        %1369 = vmatpush1.xpose.msra.mxu0 0.0
        %1370 = vmatprep.subr.mxu0 0.0
        %1371 = vmatpush1.xpose.msra.mxu0 0.0
        %1372 = vmatprep.subr.mxu0 0.0
        %1373 = vmatpush1.xpose.msra.mxu0 0.0
        %1374 = vmatprep.subr.mxu0 0.0
        %1375 = vmatpush1.xpose.msra.mxu0 0.0
        %1376 = vmatprep.subr.mxu0 0.0
        %1377 = vmatpush1.xpose.msra.mxu0 0.0
        %1378 = vmatprep.subr.mxu0 0.0
        %1379 = vmatpush1.xpose.msra.mxu0 0.0
        %1380 = vmatprep.subr.mxu0 0.0
        %1381 = vmatpush1.xpose.msra.mxu0 0.0
        %1382 = vmatprep.subr.mxu0 0.0
        %1383 = vmatpush1.xpose.msra.mxu0 0.0
        %1384 = vmatprep.subr.mxu0 0.0
        %1385 = vmatpush1.xpose.msra.mxu0 0.0
        %1386 = vmatprep.subr.mxu0 0.0
        %1387 = vmatpush1.xpose.msra.mxu0 0.0
        %1388 = vmatprep.subr.mxu0 0.0
        %1389 = vmatpush1.xpose.msra.mxu0 0.0
        %1390 = vmatprep.subr.mxu0 0.0
        %1391 = vmatpush1.xpose.msra.mxu0 0.0
        %1392 = vmatprep.subr.mxu0 0.0
        %1393 = vmatpush1.xpose.msra.mxu0 0.0
        %1394 = vmatprep.subr.mxu0 0.0
        %1395 = vmatpush1.xpose.msra.mxu0 0.0
        %1396 = vmatprep.subr.mxu0 0.0
        %1397 = vmatpush1.xpose.msra.mxu0 0.0
        %1398 = vmatprep.subr.mxu0 0.0
        %1399 = vmatpush1.xpose.msra.mxu0 0.0
        %1400 = vmatprep.subr.mxu0 0.0
        %1401 = vmatpush1.xpose.msra.mxu0 0.0
        %1402 = vmatprep.subr.mxu0 0.0
        %1403 = vmatpush1.xpose.msra.mxu0 0.0
        %1404 = vmatprep.subr.mxu0 0.0
        %1405 = vmatpush1.xpose.msra.mxu0 0.0
        %1406 = vmatprep.subr.mxu0 0.0
        %1407 = vmatpush1.xpose.msra.mxu0 0.0
        %1408 = vmatprep.subr.mxu0 0.0
        %1409 = vmatpush1.xpose.msra.mxu0 0.0
        %1410 = vmatprep.subr.mxu0 0.0
        %1411 = vmatpush1.xpose.msra.mxu0 0.0
        %1412 = vmatprep.subr.mxu0 0.0
        %1413 = vmatpush1.xpose.msra.mxu0 0.0
        %v1414 = vand.u32 %v221, 4294901760
        %v1415 = vsub.f32 %v221, %v1414
        %1416 = vmatprep.mubr.f32.mxu0 %v1415
        %v1417 = vand.u32 %v217, 4294901760
        %v1418 = vsub.f32 %v217, %v1417
        %1419 = vmatmul.mubr.f32.gmra.mrb[0].mxu0 %v1418
        %v1420 = vpop.f32.mrb[0].mxu0
        %v1421 = vadd.f32 %v1343, %v1420
        %v1422 = vpop.f32.mrb[0].mxu0
        %1423 = vdwg.mxu0
        %v1424 = vand.u32 %v192, 4294901760
        %1425 = vmatprep.subr.mxu0 %v1424
        %v1426 = vand.u32 %v191, 4294901760
        %1427 = vmatpush1.xpose.msra.mxu0 %v1426
        %1428 = vmatprep.subr.mxu0 0.0
        %1429 = vmatpush1.xpose.msra.mxu0 0.0
        %1430 = vmatprep.subr.mxu0 0.0
        %1431 = vmatpush1.xpose.msra.mxu0 0.0
        %1432 = vmatprep.subr.mxu0 0.0
        %1433 = vmatpush1.xpose.msra.mxu0 0.0
        %1434 = vmatprep.subr.mxu0 0.0
        %1435 = vmatpush1.xpose.msra.mxu0 0.0
        %1436 = vmatprep.subr.mxu0 0.0
        %1437 = vmatpush1.xpose.msra.mxu0 0.0
        %1438 = vmatprep.subr.mxu0 0.0
        %1439 = vmatpush1.xpose.msra.mxu0 0.0
        %1440 = vmatprep.subr.mxu0 0.0
        %1441 = vmatpush1.xpose.msra.mxu0 0.0
        %1442 = vmatprep.subr.mxu0 0.0
        %1443 = vmatpush1.xpose.msra.mxu0 0.0
        %1444 = vmatprep.subr.mxu0 0.0
        %1445 = vmatpush1.xpose.msra.mxu0 0.0
        %1446 = vmatprep.subr.mxu0 0.0
        %1447 = vmatpush1.xpose.msra.mxu0 0.0
        %1448 = vmatprep.subr.mxu0 0.0
        %1449 = vmatpush1.xpose.msra.mxu0 0.0
        %1450 = vmatprep.subr.mxu0 0.0
        %1451 = vmatpush1.xpose.msra.mxu0 0.0
        %1452 = vmatprep.subr.mxu0 0.0
        %1453 = vmatpush1.xpose.msra.mxu0 0.0
        %1454 = vmatprep.subr.mxu0 0.0
        %1455 = vmatpush1.xpose.msra.mxu0 0.0
        %1456 = vmatprep.subr.mxu0 0.0
        %1457 = vmatpush1.xpose.msra.mxu0 0.0
        %1458 = vmatprep.subr.mxu0 0.0
        %1459 = vmatpush1.xpose.msra.mxu0 0.0
        %1460 = vmatprep.subr.mxu0 0.0
        %1461 = vmatpush1.xpose.msra.mxu0 0.0
        %1462 = vmatprep.subr.mxu0 0.0
        %1463 = vmatpush1.xpose.msra.mxu0 0.0
        %1464 = vmatprep.subr.mxu0 0.0
        %1465 = vmatpush1.xpose.msra.mxu0 0.0
        %1466 = vmatprep.subr.mxu0 0.0
        %1467 = vmatpush1.xpose.msra.mxu0 0.0
        %1468 = vmatprep.subr.mxu0 0.0
        %1469 = vmatpush1.xpose.msra.mxu0 0.0
        %1470 = vmatprep.subr.mxu0 0.0
        %1471 = vmatpush1.xpose.msra.mxu0 0.0
        %1472 = vmatprep.subr.mxu0 0.0
        %1473 = vmatpush1.xpose.msra.mxu0 0.0
        %1474 = vmatprep.subr.mxu0 0.0
        %1475 = vmatpush1.xpose.msra.mxu0 0.0
        %1476 = vmatprep.subr.mxu0 0.0
        %1477 = vmatpush1.xpose.msra.mxu0 0.0
        %1478 = vmatprep.subr.mxu0 0.0
        %1479 = vmatpush1.xpose.msra.mxu0 0.0
        %1480 = vmatprep.subr.mxu0 0.0
        %1481 = vmatpush1.xpose.msra.mxu0 0.0
        %1482 = vmatprep.subr.mxu0 0.0
        %1483 = vmatpush1.xpose.msra.mxu0 0.0
        %1484 = vmatprep.subr.mxu0 0.0
        %1485 = vmatpush1.xpose.msra.mxu0 0.0
        %1486 = vmatprep.subr.mxu0 0.0
        %1487 = vmatpush1.xpose.msra.mxu0 0.0
        %1488 = vmatprep.subr.mxu0 0.0
        %1489 = vmatpush1.xpose.msra.mxu0 0.0
        %v1490 = vand.u32 %v221, 4294901760
        %v1491 = vsub.f32 %v221, %v1490
        %v1492 = vand.u32 %v1491, 4294901760
        %1493 = vmatprep.mubr.f32.mxu0 %v1492
        %v1494 = vand.u32 %v217, 4294901760
        %v1495 = vsub.f32 %v217, %v1494
        %v1496 = vand.u32 %v1495, 4294901760
        %1497 = vmatmul.mubr.f32.gmra.mrb[0].mxu0 %v1496
        %v1498 = vpop.f32.mrb[0].mxu0
        %v1499 = vadd.f32 %v1421, %v1498
        %v1500 = vpop.f32.mrb[0].mxu0
        %1501 = vdwg.mxu0
        %v1502 = vand.u32 %v192, 4294901760
        %v1503 = vsub.f32 %v192, %v1502
        %v1504 = vand.u32 %v1503, 4294901760
        %1505 = vmatprep.subr.mxu0 %v1504
        %v1506 = vand.u32 %v191, 4294901760
        %v1507 = vsub.f32 %v191, %v1506
        %v1508 = vand.u32 %v1507, 4294901760
        %1509 = vmatpush1.xpose.msra.mxu0 %v1508
        %1510 = vmatprep.subr.mxu0 0.0
        %1511 = vmatpush1.xpose.msra.mxu0 0.0
        %1512 = vmatprep.subr.mxu0 0.0
        %1513 = vmatpush1.xpose.msra.mxu0 0.0
        %1514 = vmatprep.subr.mxu0 0.0
        %1515 = vmatpush1.xpose.msra.mxu0 0.0
        %1516 = vmatprep.subr.mxu0 0.0
        %1517 = vmatpush1.xpose.msra.mxu0 0.0
        %1518 = vmatprep.subr.mxu0 0.0
        %1519 = vmatpush1.xpose.msra.mxu0 0.0
        %1520 = vmatprep.subr.mxu0 0.0
        %1521 = vmatpush1.xpose.msra.mxu0 0.0
        %1522 = vmatprep.subr.mxu0 0.0
        %1523 = vmatpush1.xpose.msra.mxu0 0.0
        %1524 = vmatprep.subr.mxu0 0.0
        %1525 = vmatpush1.xpose.msra.mxu0 0.0
        %1526 = vmatprep.subr.mxu0 0.0
        %1527 = vmatpush1.xpose.msra.mxu0 0.0
        %1528 = vmatprep.subr.mxu0 0.0
        %1529 = vmatpush1.xpose.msra.mxu0 0.0
        %1530 = vmatprep.subr.mxu0 0.0
        %1531 = vmatpush1.xpose.msra.mxu0 0.0
        %1532 = vmatprep.subr.mxu0 0.0
        %1533 = vmatpush1.xpose.msra.mxu0 0.0
        %1534 = vmatprep.subr.mxu0 0.0
        %1535 = vmatpush1.xpose.msra.mxu0 0.0
        %1536 = vmatprep.subr.mxu0 0.0
        %1537 = vmatpush1.xpose.msra.mxu0 0.0
        %1538 = vmatprep.subr.mxu0 0.0
        %1539 = vmatpush1.xpose.msra.mxu0 0.0
        %1540 = vmatprep.subr.mxu0 0.0
        %1541 = vmatpush1.xpose.msra.mxu0 0.0
        %1542 = vmatprep.subr.mxu0 0.0
        %1543 = vmatpush1.xpose.msra.mxu0 0.0
        %1544 = vmatprep.subr.mxu0 0.0
        %1545 = vmatpush1.xpose.msra.mxu0 0.0
        %1546 = vmatprep.subr.mxu0 0.0
        %1547 = vmatpush1.xpose.msra.mxu0 0.0
        %1548 = vmatprep.subr.mxu0 0.0
        %1549 = vmatpush1.xpose.msra.mxu0 0.0
        %1550 = vmatprep.subr.mxu0 0.0
        %1551 = vmatpush1.xpose.msra.mxu0 0.0
        %1552 = vmatprep.subr.mxu0 0.0
        %1553 = vmatpush1.xpose.msra.mxu0 0.0
        %1554 = vmatprep.subr.mxu0 0.0
        %1555 = vmatpush1.xpose.msra.mxu0 0.0
        %1556 = vmatprep.subr.mxu0 0.0
        %1557 = vmatpush1.xpose.msra.mxu0 0.0
        %1558 = vmatprep.subr.mxu0 0.0
        %1559 = vmatpush1.xpose.msra.mxu0 0.0
        %1560 = vmatprep.subr.mxu0 0.0
        %1561 = vmatpush1.xpose.msra.mxu0 0.0
        %1562 = vmatprep.subr.mxu0 0.0
        %1563 = vmatpush1.xpose.msra.mxu0 0.0
        %1564 = vmatprep.subr.mxu0 0.0
        %1565 = vmatpush1.xpose.msra.mxu0 0.0
        %1566 = vmatprep.subr.mxu0 0.0
        %1567 = vmatpush1.xpose.msra.mxu0 0.0
        %1568 = vmatprep.subr.mxu0 0.0
        %1569 = vmatpush1.xpose.msra.mxu0 0.0
        %1570 = vmatprep.subr.mxu0 0.0
        %1571 = vmatpush1.xpose.msra.mxu0 0.0
        %v1572 = vand.u32 %v221, 4294901760
        %1573 = vmatprep.mubr.f32.mxu0 %v1572
        %v1574 = vand.u32 %v217, 4294901760
        %1575 = vmatmul.mubr.f32.gmra.mrb[0].mxu0 %v1574
        %v1576 = vpop.f32.mrb[0].mxu0
        %v1577 = vadd.f32 %v1499, %v1576
        %v1578 = vpop.f32.mrb[0].mxu0
        %1579 = vdwg.mxu0
        %v1580 = vand.u32 %v192, 4294901760
        %1581 = vmatprep.subr.mxu0 %v1580
        %v1582 = vand.u32 %v191, 4294901760
        %1583 = vmatpush1.xpose.msra.mxu0 %v1582
        %1584 = vmatprep.subr.mxu0 0.0
        %1585 = vmatpush1.xpose.msra.mxu0 0.0
        %1586 = vmatprep.subr.mxu0 0.0
        %1587 = vmatpush1.xpose.msra.mxu0 0.0
        %1588 = vmatprep.subr.mxu0 0.0
        %1589 = vmatpush1.xpose.msra.mxu0 0.0
        %1590 = vmatprep.subr.mxu0 0.0
        %1591 = vmatpush1.xpose.msra.mxu0 0.0
        %1592 = vmatprep.subr.mxu0 0.0
        %1593 = vmatpush1.xpose.msra.mxu0 0.0
        %1594 = vmatprep.subr.mxu0 0.0
        %1595 = vmatpush1.xpose.msra.mxu0 0.0
        %1596 = vmatprep.subr.mxu0 0.0
        %1597 = vmatpush1.xpose.msra.mxu0 0.0
        %1598 = vmatprep.subr.mxu0 0.0
        %1599 = vmatpush1.xpose.msra.mxu0 0.0
        %1600 = vmatprep.subr.mxu0 0.0
        %1601 = vmatpush1.xpose.msra.mxu0 0.0
        %1602 = vmatprep.subr.mxu0 0.0
        %1603 = vmatpush1.xpose.msra.mxu0 0.0
        %1604 = vmatprep.subr.mxu0 0.0
        %1605 = vmatpush1.xpose.msra.mxu0 0.0
        %1606 = vmatprep.subr.mxu0 0.0
        %1607 = vmatpush1.xpose.msra.mxu0 0.0
        %1608 = vmatprep.subr.mxu0 0.0
        %1609 = vmatpush1.xpose.msra.mxu0 0.0
        %1610 = vmatprep.subr.mxu0 0.0
        %1611 = vmatpush1.xpose.msra.mxu0 0.0
        %1612 = vmatprep.subr.mxu0 0.0
        %1613 = vmatpush1.xpose.msra.mxu0 0.0
        %1614 = vmatprep.subr.mxu0 0.0
        %1615 = vmatpush1.xpose.msra.mxu0 0.0
        %1616 = vmatprep.subr.mxu0 0.0
        %1617 = vmatpush1.xpose.msra.mxu0 0.0
        %1618 = vmatprep.subr.mxu0 0.0
        %1619 = vmatpush1.xpose.msra.mxu0 0.0
        %1620 = vmatprep.subr.mxu0 0.0
        %1621 = vmatpush1.xpose.msra.mxu0 0.0
        %1622 = vmatprep.subr.mxu0 0.0
        %1623 = vmatpush1.xpose.msra.mxu0 0.0
        %1624 = vmatprep.subr.mxu0 0.0
        %1625 = vmatpush1.xpose.msra.mxu0 0.0
        %1626 = vmatprep.subr.mxu0 0.0
        %1627 = vmatpush1.xpose.msra.mxu0 0.0
        %1628 = vmatprep.subr.mxu0 0.0
        %1629 = vmatpush1.xpose.msra.mxu0 0.0
        %1630 = vmatprep.subr.mxu0 0.0
        %1631 = vmatpush1.xpose.msra.mxu0 0.0
        %1632 = vmatprep.subr.mxu0 0.0
        %1633 = vmatpush1.xpose.msra.mxu0 0.0
        %1634 = vmatprep.subr.mxu0 0.0
        %1635 = vmatpush1.xpose.msra.mxu0 0.0
        %1636 = vmatprep.subr.mxu0 0.0
        %1637 = vmatpush1.xpose.msra.mxu0 0.0
        %1638 = vmatprep.subr.mxu0 0.0
        %1639 = vmatpush1.xpose.msra.mxu0 0.0
        %1640 = vmatprep.subr.mxu0 0.0
        %1641 = vmatpush1.xpose.msra.mxu0 0.0
        %1642 = vmatprep.subr.mxu0 0.0
        %1643 = vmatpush1.xpose.msra.mxu0 0.0
        %1644 = vmatprep.subr.mxu0 0.0
        %1645 = vmatpush1.xpose.msra.mxu0 0.0
        %v1646 = vand.u32 %v221, 4294901760
        %1647 = vmatprep.mubr.f32.mxu0 %v1646
        %v1648 = vand.u32 %v217, 4294901760
        %1649 = vmatmul.mubr.f32.gmra.mrb[0].mxu0 %v1648
        %v1650 = vpop.f32.mrb[0].mxu0
        %v1651 = vadd.f32 %v1577, %v1650
        %v1652 = vpop.f32.mrb[0].mxu0
        %1653 = vdwg.mxu0
        %1654 = vmatprep.subr.mxu0 0.0
        %v1655 = vand.u32 %v236, 4294901760
        %1656 = vmatpush1.xpose.msra.mxu0 %v1655
        %1657 = vmatprep.subr.mxu0 0.0
        %1658 = vmatpush1.xpose.msra.mxu0 0.0
        %1659 = vmatprep.subr.mxu0 0.0
        %1660 = vmatpush1.xpose.msra.mxu0 0.0
        %1661 = vmatprep.subr.mxu0 0.0
        %1662 = vmatpush1.xpose.msra.mxu0 0.0
        %1663 = vmatprep.subr.mxu0 0.0
        %1664 = vmatpush1.xpose.msra.mxu0 0.0
        %1665 = vmatprep.subr.mxu0 0.0
        %1666 = vmatpush1.xpose.msra.mxu0 0.0
        %1667 = vmatprep.subr.mxu0 0.0
        %1668 = vmatpush1.xpose.msra.mxu0 0.0
        %1669 = vmatprep.subr.mxu0 0.0
        %1670 = vmatpush1.xpose.msra.mxu0 0.0
        %1671 = vmatprep.subr.mxu0 0.0
        %1672 = vmatpush1.xpose.msra.mxu0 0.0
        %1673 = vmatprep.subr.mxu0 0.0
        %1674 = vmatpush1.xpose.msra.mxu0 0.0
        %1675 = vmatprep.subr.mxu0 0.0
        %1676 = vmatpush1.xpose.msra.mxu0 0.0
        %1677 = vmatprep.subr.mxu0 0.0
        %1678 = vmatpush1.xpose.msra.mxu0 0.0
        %1679 = vmatprep.subr.mxu0 0.0
        %1680 = vmatpush1.xpose.msra.mxu0 0.0
        %1681 = vmatprep.subr.mxu0 0.0
        %1682 = vmatpush1.xpose.msra.mxu0 0.0
        %1683 = vmatprep.subr.mxu0 0.0
        %1684 = vmatpush1.xpose.msra.mxu0 0.0
        %1685 = vmatprep.subr.mxu0 0.0
        %1686 = vmatpush1.xpose.msra.mxu0 0.0
        %1687 = vmatprep.subr.mxu0 0.0
        %1688 = vmatpush1.xpose.msra.mxu0 0.0
        %1689 = vmatprep.subr.mxu0 0.0
        %1690 = vmatpush1.xpose.msra.mxu0 0.0
        %1691 = vmatprep.subr.mxu0 0.0
        %1692 = vmatpush1.xpose.msra.mxu0 0.0
        %1693 = vmatprep.subr.mxu0 0.0
        %1694 = vmatpush1.xpose.msra.mxu0 0.0
        %1695 = vmatprep.subr.mxu0 0.0
        %1696 = vmatpush1.xpose.msra.mxu0 0.0
        %1697 = vmatprep.subr.mxu0 0.0
        %1698 = vmatpush1.xpose.msra.mxu0 0.0
        %1699 = vmatprep.subr.mxu0 0.0
        %1700 = vmatpush1.xpose.msra.mxu0 0.0
        %1701 = vmatprep.subr.mxu0 0.0
        %1702 = vmatpush1.xpose.msra.mxu0 0.0
        %1703 = vmatprep.subr.mxu0 0.0
        %1704 = vmatpush1.xpose.msra.mxu0 0.0
        %1705 = vmatprep.subr.mxu0 0.0
        %1706 = vmatpush1.xpose.msra.mxu0 0.0
        %1707 = vmatprep.subr.mxu0 0.0
        %1708 = vmatpush1.xpose.msra.mxu0 0.0
        %1709 = vmatprep.subr.mxu0 0.0
        %1710 = vmatpush1.xpose.msra.mxu0 0.0
        %1711 = vmatprep.subr.mxu0 0.0
        %1712 = vmatpush1.xpose.msra.mxu0 0.0
        %1713 = vmatprep.subr.mxu0 0.0
        %1714 = vmatpush1.xpose.msra.mxu0 0.0
        %1715 = vmatprep.subr.mxu0 0.0
        %1716 = vmatpush1.xpose.msra.mxu0 0.0
        %1717 = vmatprep.subr.mxu0 0.0
        %1718 = vmatpush1.xpose.msra.mxu0 0.0
        %1719 = vmatprep.mubr.f32.mxu0 0.0
        %v1720 = vand.u32 %v233, 4294901760
        %v1721 = vsub.f32 %v233, %v1720
        %v1722 = vand.u32 %v1721, 4294901760
        %v1723 = vsub.f32 %v1721, %v1722
        %v1724 = vand.u32 %v1723, 4294901760
        %1725 = vmatmul.mubr.f32.gmra.mrb[0].mxu0 %v1724
        %v1726 = vpop.f32.mrb[0].mxu0
        %v1727 = vadd.f32 %v1651, %v1726
        %v1728 = vpop.f32.mrb[0].mxu0
        %1729 = vdwg.mxu0
        %1730 = vmatprep.subr.mxu0 0.0
        %v1731 = vand.u32 %v236, 4294901760
        %v1732 = vsub.f32 %v236, %v1731
        %v1733 = vand.u32 %v1732, 4294901760
        %v1734 = vsub.f32 %v1732, %v1733
        %v1735 = vand.u32 %v1734, 4294901760
        %1736 = vmatpush1.xpose.msra.mxu0 %v1735
        %1737 = vmatprep.subr.mxu0 0.0
        %1738 = vmatpush1.xpose.msra.mxu0 0.0
        %1739 = vmatprep.subr.mxu0 0.0
        %1740 = vmatpush1.xpose.msra.mxu0 0.0
        %1741 = vmatprep.subr.mxu0 0.0
        %1742 = vmatpush1.xpose.msra.mxu0 0.0
        %1743 = vmatprep.subr.mxu0 0.0
        %1744 = vmatpush1.xpose.msra.mxu0 0.0
        %1745 = vmatprep.subr.mxu0 0.0
        %1746 = vmatpush1.xpose.msra.mxu0 0.0
        %1747 = vmatprep.subr.mxu0 0.0
        %1748 = vmatpush1.xpose.msra.mxu0 0.0
        %1749 = vmatprep.subr.mxu0 0.0
        %1750 = vmatpush1.xpose.msra.mxu0 0.0
        %1751 = vmatprep.subr.mxu0 0.0
        %1752 = vmatpush1.xpose.msra.mxu0 0.0
        %1753 = vmatprep.subr.mxu0 0.0
        %1754 = vmatpush1.xpose.msra.mxu0 0.0
        %1755 = vmatprep.subr.mxu0 0.0
        %1756 = vmatpush1.xpose.msra.mxu0 0.0
        %1757 = vmatprep.subr.mxu0 0.0
        %1758 = vmatpush1.xpose.msra.mxu0 0.0
        %1759 = vmatprep.subr.mxu0 0.0
        %1760 = vmatpush1.xpose.msra.mxu0 0.0
        %1761 = vmatprep.subr.mxu0 0.0
        %1762 = vmatpush1.xpose.msra.mxu0 0.0
        %1763 = vmatprep.subr.mxu0 0.0
        %1764 = vmatpush1.xpose.msra.mxu0 0.0
        %1765 = vmatprep.subr.mxu0 0.0
        %1766 = vmatpush1.xpose.msra.mxu0 0.0
        %1767 = vmatprep.subr.mxu0 0.0
        %1768 = vmatpush1.xpose.msra.mxu0 0.0
        %1769 = vmatprep.subr.mxu0 0.0
        %1770 = vmatpush1.xpose.msra.mxu0 0.0
        %1771 = vmatprep.subr.mxu0 0.0
        %1772 = vmatpush1.xpose.msra.mxu0 0.0
        %1773 = vmatprep.subr.mxu0 0.0
        %1774 = vmatpush1.xpose.msra.mxu0 0.0
        %1775 = vmatprep.subr.mxu0 0.0
        %1776 = vmatpush1.xpose.msra.mxu0 0.0
        %1777 = vmatprep.subr.mxu0 0.0
        %1778 = vmatpush1.xpose.msra.mxu0 0.0
        %1779 = vmatprep.subr.mxu0 0.0
        %1780 = vmatpush1.xpose.msra.mxu0 0.0
        %1781 = vmatprep.subr.mxu0 0.0
        %1782 = vmatpush1.xpose.msra.mxu0 0.0
        %1783 = vmatprep.subr.mxu0 0.0
        %1784 = vmatpush1.xpose.msra.mxu0 0.0
        %1785 = vmatprep.subr.mxu0 0.0
        %1786 = vmatpush1.xpose.msra.mxu0 0.0
        %1787 = vmatprep.subr.mxu0 0.0
        %1788 = vmatpush1.xpose.msra.mxu0 0.0
        %1789 = vmatprep.subr.mxu0 0.0
        %1790 = vmatpush1.xpose.msra.mxu0 0.0
        %1791 = vmatprep.subr.mxu0 0.0
        %1792 = vmatpush1.xpose.msra.mxu0 0.0
        %1793 = vmatprep.subr.mxu0 0.0
        %1794 = vmatpush1.xpose.msra.mxu0 0.0
        %1795 = vmatprep.subr.mxu0 0.0
        %1796 = vmatpush1.xpose.msra.mxu0 0.0
        %1797 = vmatprep.subr.mxu0 0.0
        %1798 = vmatpush1.xpose.msra.mxu0 0.0
        %1799 = vmatprep.mubr.f32.mxu0 0.0
        %v1800 = vand.u32 %v233, 4294901760
        %1801 = vmatmul.mubr.f32.gmra.mrb[0].mxu0 %v1800
        %v1802 = vpop.f32.mrb[0].mxu0
        %v1803 = vadd.f32 %v1727, %v1802
        %v1804 = vpop.f32.mrb[0].mxu0
        %1805 = vdwg.mxu0
        %1806 = vmatprep.subr.mxu0 0.0
        %v1807 = vand.u32 %v236, 4294901760
        %v1808 = vsub.f32 %v236, %v1807
        %1809 = vmatpush1.xpose.msra.mxu0 %v1808
        %1810 = vmatprep.subr.mxu0 0.0
        %1811 = vmatpush1.xpose.msra.mxu0 0.0
        %1812 = vmatprep.subr.mxu0 0.0
        %1813 = vmatpush1.xpose.msra.mxu0 0.0
        %1814 = vmatprep.subr.mxu0 0.0
        %1815 = vmatpush1.xpose.msra.mxu0 0.0
        %1816 = vmatprep.subr.mxu0 0.0
        %1817 = vmatpush1.xpose.msra.mxu0 0.0
        %1818 = vmatprep.subr.mxu0 0.0
        %1819 = vmatpush1.xpose.msra.mxu0 0.0
        %1820 = vmatprep.subr.mxu0 0.0
        %1821 = vmatpush1.xpose.msra.mxu0 0.0
        %1822 = vmatprep.subr.mxu0 0.0
        %1823 = vmatpush1.xpose.msra.mxu0 0.0
        %1824 = vmatprep.subr.mxu0 0.0
        %1825 = vmatpush1.xpose.msra.mxu0 0.0
        %1826 = vmatprep.subr.mxu0 0.0
        %1827 = vmatpush1.xpose.msra.mxu0 0.0
        %1828 = vmatprep.subr.mxu0 0.0
        %1829 = vmatpush1.xpose.msra.mxu0 0.0
        %1830 = vmatprep.subr.mxu0 0.0
        %1831 = vmatpush1.xpose.msra.mxu0 0.0
        %1832 = vmatprep.subr.mxu0 0.0
        %1833 = vmatpush1.xpose.msra.mxu0 0.0
        %1834 = vmatprep.subr.mxu0 0.0
        %1835 = vmatpush1.xpose.msra.mxu0 0.0
        %1836 = vmatprep.subr.mxu0 0.0
        %1837 = vmatpush1.xpose.msra.mxu0 0.0
        %1838 = vmatprep.subr.mxu0 0.0
        %1839 = vmatpush1.xpose.msra.mxu0 0.0
        %1840 = vmatprep.subr.mxu0 0.0
        %1841 = vmatpush1.xpose.msra.mxu0 0.0
        %1842 = vmatprep.subr.mxu0 0.0
        %1843 = vmatpush1.xpose.msra.mxu0 0.0
        %1844 = vmatprep.subr.mxu0 0.0
        %1845 = vmatpush1.xpose.msra.mxu0 0.0
        %1846 = vmatprep.subr.mxu0 0.0
        %1847 = vmatpush1.xpose.msra.mxu0 0.0
        %1848 = vmatprep.subr.mxu0 0.0
        %1849 = vmatpush1.xpose.msra.mxu0 0.0
        %1850 = vmatprep.subr.mxu0 0.0
        %1851 = vmatpush1.xpose.msra.mxu0 0.0
        %1852 = vmatprep.subr.mxu0 0.0
        %1853 = vmatpush1.xpose.msra.mxu0 0.0
        %1854 = vmatprep.subr.mxu0 0.0
        %1855 = vmatpush1.xpose.msra.mxu0 0.0
        %1856 = vmatprep.subr.mxu0 0.0
        %1857 = vmatpush1.xpose.msra.mxu0 0.0
        %1858 = vmatprep.subr.mxu0 0.0
        %1859 = vmatpush1.xpose.msra.mxu0 0.0
        %1860 = vmatprep.subr.mxu0 0.0
        %1861 = vmatpush1.xpose.msra.mxu0 0.0
        %1862 = vmatprep.subr.mxu0 0.0
        %1863 = vmatpush1.xpose.msra.mxu0 0.0
        %1864 = vmatprep.subr.mxu0 0.0
        %1865 = vmatpush1.xpose.msra.mxu0 0.0
        %1866 = vmatprep.subr.mxu0 0.0
        %1867 = vmatpush1.xpose.msra.mxu0 0.0
        %1868 = vmatprep.subr.mxu0 0.0
        %1869 = vmatpush1.xpose.msra.mxu0 0.0
        %1870 = vmatprep.subr.mxu0 0.0
        %1871 = vmatpush1.xpose.msra.mxu0 0.0
        %1872 = vmatprep.mubr.f32.mxu0 0.0
        %v1873 = vand.u32 %v233, 4294901760
        %v1874 = vsub.f32 %v233, %v1873
        %1875 = vmatmul.mubr.f32.gmra.mrb[0].mxu0 %v1874
        %v1876 = vpop.f32.mrb[0].mxu0
        %v1877 = vadd.f32 %v1803, %v1876
        %v1878 = vpop.f32.mrb[0].mxu0
        %1879 = vdwg.mxu0
        %1880 = vmatprep.subr.mxu0 0.0
        %v1881 = vand.u32 %v236, 4294901760
        %1882 = vmatpush1.xpose.msra.mxu0 %v1881
        %1883 = vmatprep.subr.mxu0 0.0
        %1884 = vmatpush1.xpose.msra.mxu0 0.0
        %1885 = vmatprep.subr.mxu0 0.0
        %1886 = vmatpush1.xpose.msra.mxu0 0.0
        %1887 = vmatprep.subr.mxu0 0.0
        %1888 = vmatpush1.xpose.msra.mxu0 0.0
        %1889 = vmatprep.subr.mxu0 0.0
        %1890 = vmatpush1.xpose.msra.mxu0 0.0
        %1891 = vmatprep.subr.mxu0 0.0
        %1892 = vmatpush1.xpose.msra.mxu0 0.0
        %1893 = vmatprep.subr.mxu0 0.0
        %1894 = vmatpush1.xpose.msra.mxu0 0.0
        %1895 = vmatprep.subr.mxu0 0.0
        %1896 = vmatpush1.xpose.msra.mxu0 0.0
        %1897 = vmatprep.subr.mxu0 0.0
        %1898 = vmatpush1.xpose.msra.mxu0 0.0
        %1899 = vmatprep.subr.mxu0 0.0
        %1900 = vmatpush1.xpose.msra.mxu0 0.0
        %1901 = vmatprep.subr.mxu0 0.0
        %1902 = vmatpush1.xpose.msra.mxu0 0.0
        %1903 = vmatprep.subr.mxu0 0.0
        %1904 = vmatpush1.xpose.msra.mxu0 0.0
        %1905 = vmatprep.subr.mxu0 0.0
        %1906 = vmatpush1.xpose.msra.mxu0 0.0
        %1907 = vmatprep.subr.mxu0 0.0
        %1908 = vmatpush1.xpose.msra.mxu0 0.0
        %1909 = vmatprep.subr.mxu0 0.0
        %1910 = vmatpush1.xpose.msra.mxu0 0.0
        %1911 = vmatprep.subr.mxu0 0.0
        %1912 = vmatpush1.xpose.msra.mxu0 0.0
        %1913 = vmatprep.subr.mxu0 0.0
        %1914 = vmatpush1.xpose.msra.mxu0 0.0
        %1915 = vmatprep.subr.mxu0 0.0
        %1916 = vmatpush1.xpose.msra.mxu0 0.0
        %1917 = vmatprep.subr.mxu0 0.0
        %1918 = vmatpush1.xpose.msra.mxu0 0.0
        %1919 = vmatprep.subr.mxu0 0.0
        %1920 = vmatpush1.xpose.msra.mxu0 0.0
        %1921 = vmatprep.subr.mxu0 0.0
        %1922 = vmatpush1.xpose.msra.mxu0 0.0
        %1923 = vmatprep.subr.mxu0 0.0
        %1924 = vmatpush1.xpose.msra.mxu0 0.0
        %1925 = vmatprep.subr.mxu0 0.0
        %1926 = vmatpush1.xpose.msra.mxu0 0.0
        %1927 = vmatprep.subr.mxu0 0.0
        %1928 = vmatpush1.xpose.msra.mxu0 0.0
        %1929 = vmatprep.subr.mxu0 0.0
        %1930 = vmatpush1.xpose.msra.mxu0 0.0
        %1931 = vmatprep.subr.mxu0 0.0
        %1932 = vmatpush1.xpose.msra.mxu0 0.0
        %1933 = vmatprep.subr.mxu0 0.0
        %1934 = vmatpush1.xpose.msra.mxu0 0.0
        %1935 = vmatprep.subr.mxu0 0.0
        %1936 = vmatpush1.xpose.msra.mxu0 0.0
        %1937 = vmatprep.subr.mxu0 0.0
        %1938 = vmatpush1.xpose.msra.mxu0 0.0
        %1939 = vmatprep.subr.mxu0 0.0
        %1940 = vmatpush1.xpose.msra.mxu0 0.0
        %1941 = vmatprep.subr.mxu0 0.0
        %1942 = vmatpush1.xpose.msra.mxu0 0.0
        %1943 = vmatprep.subr.mxu0 0.0
        %1944 = vmatpush1.xpose.msra.mxu0 0.0
        %1945 = vmatprep.mubr.f32.mxu0 0.0
        %v1946 = vand.u32 %v233, 4294901760
        %v1947 = vsub.f32 %v233, %v1946
        %v1948 = vand.u32 %v1947, 4294901760
        %1949 = vmatmul.mubr.f32.gmra.mrb[0].mxu0 %v1948
        %v1950 = vpop.f32.mrb[0].mxu0
        %v1951 = vadd.f32 %v1877, %v1950
        %v1952 = vpop.f32.mrb[0].mxu0
        %1953 = vdwg.mxu0
        %1954 = vmatprep.subr.mxu0 0.0
        %v1955 = vand.u32 %v236, 4294901760
        %v1956 = vsub.f32 %v236, %v1955
        %v1957 = vand.u32 %v1956, 4294901760
        %1958 = vmatpush1.xpose.msra.mxu0 %v1957
        %1959 = vmatprep.subr.mxu0 0.0
        %1960 = vmatpush1.xpose.msra.mxu0 0.0
        %1961 = vmatprep.subr.mxu0 0.0
        %1962 = vmatpush1.xpose.msra.mxu0 0.0
        %1963 = vmatprep.subr.mxu0 0.0
        %1964 = vmatpush1.xpose.msra.mxu0 0.0
        %1965 = vmatprep.subr.mxu0 0.0
        %1966 = vmatpush1.xpose.msra.mxu0 0.0
        %1967 = vmatprep.subr.mxu0 0.0
        %1968 = vmatpush1.xpose.msra.mxu0 0.0
        %1969 = vmatprep.subr.mxu0 0.0
        %1970 = vmatpush1.xpose.msra.mxu0 0.0
        %1971 = vmatprep.subr.mxu0 0.0
        %1972 = vmatpush1.xpose.msra.mxu0 0.0
        %1973 = vmatprep.subr.mxu0 0.0
        %1974 = vmatpush1.xpose.msra.mxu0 0.0
        %1975 = vmatprep.subr.mxu0 0.0
        %1976 = vmatpush1.xpose.msra.mxu0 0.0
        %1977 = vmatprep.subr.mxu0 0.0
        %1978 = vmatpush1.xpose.msra.mxu0 0.0
        %1979 = vmatprep.subr.mxu0 0.0
        %1980 = vmatpush1.xpose.msra.mxu0 0.0
        %1981 = vmatprep.subr.mxu0 0.0
        %1982 = vmatpush1.xpose.msra.mxu0 0.0
        %1983 = vmatprep.subr.mxu0 0.0
        %1984 = vmatpush1.xpose.msra.mxu0 0.0
        %1985 = vmatprep.subr.mxu0 0.0
        %1986 = vmatpush1.xpose.msra.mxu0 0.0
        %1987 = vmatprep.subr.mxu0 0.0
        %1988 = vmatpush1.xpose.msra.mxu0 0.0
        %1989 = vmatprep.subr.mxu0 0.0
        %1990 = vmatpush1.xpose.msra.mxu0 0.0
        %1991 = vmatprep.subr.mxu0 0.0
        %1992 = vmatpush1.xpose.msra.mxu0 0.0
        %1993 = vmatprep.subr.mxu0 0.0
        %1994 = vmatpush1.xpose.msra.mxu0 0.0
        %1995 = vmatprep.subr.mxu0 0.0
        %1996 = vmatpush1.xpose.msra.mxu0 0.0
        %1997 = vmatprep.subr.mxu0 0.0
        %1998 = vmatpush1.xpose.msra.mxu0 0.0
        %1999 = vmatprep.subr.mxu0 0.0
        %2000 = vmatpush1.xpose.msra.mxu0 0.0
        %2001 = vmatprep.subr.mxu0 0.0
        %2002 = vmatpush1.xpose.msra.mxu0 0.0
        %2003 = vmatprep.subr.mxu0 0.0
        %2004 = vmatpush1.xpose.msra.mxu0 0.0
        %2005 = vmatprep.subr.mxu0 0.0
        %2006 = vmatpush1.xpose.msra.mxu0 0.0
        %2007 = vmatprep.subr.mxu0 0.0
        %2008 = vmatpush1.xpose.msra.mxu0 0.0
        %2009 = vmatprep.subr.mxu0 0.0
        %2010 = vmatpush1.xpose.msra.mxu0 0.0
        %2011 = vmatprep.subr.mxu0 0.0
        %2012 = vmatpush1.xpose.msra.mxu0 0.0
        %2013 = vmatprep.subr.mxu0 0.0
        %2014 = vmatpush1.xpose.msra.mxu0 0.0
        %2015 = vmatprep.subr.mxu0 0.0
        %2016 = vmatpush1.xpose.msra.mxu0 0.0
        %2017 = vmatprep.subr.mxu0 0.0
        %2018 = vmatpush1.xpose.msra.mxu0 0.0
        %2019 = vmatprep.subr.mxu0 0.0
        %2020 = vmatpush1.xpose.msra.mxu0 0.0
        %2021 = vmatprep.mubr.f32.mxu0 0.0
        %v2022 = vand.u32 %v233, 4294901760
        %2023 = vmatmul.mubr.f32.gmra.mrb[0].mxu0 %v2022
        %v2024 = vpop.f32.mrb[0].mxu0
        %v2025 = vadd.f32 %v1951, %v2024
        %v2026 = vpop.f32.mrb[0].mxu0
        %2027 = vdwg.mxu0
        %2028 = vmatprep.subr.mxu0 0.0
        %v2029 = vand.u32 %v236, 4294901760
        %2030 = vmatpush1.xpose.msra.mxu0 %v2029
        %2031 = vmatprep.subr.mxu0 0.0
        %2032 = vmatpush1.xpose.msra.mxu0 0.0
        %2033 = vmatprep.subr.mxu0 0.0
        %2034 = vmatpush1.xpose.msra.mxu0 0.0
        %2035 = vmatprep.subr.mxu0 0.0
        %2036 = vmatpush1.xpose.msra.mxu0 0.0
        %2037 = vmatprep.subr.mxu0 0.0
        %2038 = vmatpush1.xpose.msra.mxu0 0.0
        %2039 = vmatprep.subr.mxu0 0.0
        %2040 = vmatpush1.xpose.msra.mxu0 0.0
        %2041 = vmatprep.subr.mxu0 0.0
        %2042 = vmatpush1.xpose.msra.mxu0 0.0
        %2043 = vmatprep.subr.mxu0 0.0
        %2044 = vmatpush1.xpose.msra.mxu0 0.0
        %2045 = vmatprep.subr.mxu0 0.0
        %2046 = vmatpush1.xpose.msra.mxu0 0.0
        %2047 = vmatprep.subr.mxu0 0.0
        %2048 = vmatpush1.xpose.msra.mxu0 0.0
        %2049 = vmatprep.subr.mxu0 0.0
        %2050 = vmatpush1.xpose.msra.mxu0 0.0
        %2051 = vmatprep.subr.mxu0 0.0
        %2052 = vmatpush1.xpose.msra.mxu0 0.0
        %2053 = vmatprep.subr.mxu0 0.0
        %2054 = vmatpush1.xpose.msra.mxu0 0.0
        %2055 = vmatprep.subr.mxu0 0.0
        %2056 = vmatpush1.xpose.msra.mxu0 0.0
        %2057 = vmatprep.subr.mxu0 0.0
        %2058 = vmatpush1.xpose.msra.mxu0 0.0
        %2059 = vmatprep.subr.mxu0 0.0
        %2060 = vmatpush1.xpose.msra.mxu0 0.0
        %2061 = vmatprep.subr.mxu0 0.0
        %2062 = vmatpush1.xpose.msra.mxu0 0.0
        %2063 = vmatprep.subr.mxu0 0.0
        %2064 = vmatpush1.xpose.msra.mxu0 0.0
        %2065 = vmatprep.subr.mxu0 0.0
        %2066 = vmatpush1.xpose.msra.mxu0 0.0
        %2067 = vmatprep.subr.mxu0 0.0
        %2068 = vmatpush1.xpose.msra.mxu0 0.0
        %2069 = vmatprep.subr.mxu0 0.0
        %2070 = vmatpush1.xpose.msra.mxu0 0.0
        %2071 = vmatprep.subr.mxu0 0.0
        %2072 = vmatpush1.xpose.msra.mxu0 0.0
        %2073 = vmatprep.subr.mxu0 0.0
        %2074 = vmatpush1.xpose.msra.mxu0 0.0
        %2075 = vmatprep.subr.mxu0 0.0
        %2076 = vmatpush1.xpose.msra.mxu0 0.0
        %2077 = vmatprep.subr.mxu0 0.0
        %2078 = vmatpush1.xpose.msra.mxu0 0.0
        %2079 = vmatprep.subr.mxu0 0.0
        %2080 = vmatpush1.xpose.msra.mxu0 0.0
        %2081 = vmatprep.subr.mxu0 0.0
        %2082 = vmatpush1.xpose.msra.mxu0 0.0
        %2083 = vmatprep.subr.mxu0 0.0
        %2084 = vmatpush1.xpose.msra.mxu0 0.0
        %2085 = vmatprep.subr.mxu0 0.0
        %2086 = vmatpush1.xpose.msra.mxu0 0.0
        %2087 = vmatprep.subr.mxu0 0.0
        %2088 = vmatpush1.xpose.msra.mxu0 0.0
        %2089 = vmatprep.subr.mxu0 0.0
        %2090 = vmatpush1.xpose.msra.mxu0 0.0
        %2091 = vmatprep.subr.mxu0 0.0
        %2092 = vmatpush1.xpose.msra.mxu0 0.0
        %2093 = vmatprep.mubr.f32.mxu0 0.0
        %v2094 = vand.u32 %v233, 4294901760
        %2095 = vmatmul.mubr.f32.gmra.mrb[0].mxu0 %v2094
        %v2096 = vpop.f32.mrb[0].mxu0
        %v2097 = vadd.f32 %v2025, %v2096
        %v2098 = vpop.f32.mrb[0].mxu0
        %2099 = vdwg.mxu0
        %v2100 = vxor.u32 %v2097, 2147483648
        %v2101 = vmul.f32 %v2100, 1.442695
        %v2102 = vpow.pop %v2101
        %v2103 = vadd.f32 %v2102, 1.0
        %v2104 = vrcp.pop %v2103
        %v2105 = vmul.f32 1.0, %v2104
        %vm2106 = vcmask 57344
        %2107 = vst.msk [vmem:[%s186] sm:$0x1] %vm2106, %v2105
        %s2108 = sand.u32 %s97, 1
        %s2109 = scalar_lea.sflag [#allocation5], %s2108
        %s2110 = sand.u32 %s97, 1
        %s2111 = scalar_lea.vmem [#allocation6], %s2110
        // Predicated region
        $region37: #{tpu_custom_call.1} parent=31 // pred_check
          %p2112 = pneg %p107
        $region38: #{tpu_custom_call.1} parent=31 // pred_check_branch
          %2114 = sbr.rel (%p2112) target = $region40
        $region39: #{tpu_custom_call.1} parent=31 // pred_region
          %s2116 = ssub.s32 16, 16
          %2117 = vsyncadd %s2109, %s2116
          %s2118 = smul.addr %s21, 16
          %s2119 = scalar_lea.hbm %s3, %s2118
          %s2121 = sshll.u32 %s2111, 4
          %s2122 = int_to_ptr.vmem [resolvable:$true] %s2121
          %2124 = dma.vmem_to_hbm [thread:$0]  %s2122, 16, %s2119, %s2109
        $region40: #{tpu_custom_call.1} parent=31 // pred_fallthru
          _
      $region32: #{tpu_custom_call.1} parent=5 // pred_fallthru
        _
      %p2125 = scmp.le.s32.totalorder 2, %s16
      // Predicated region
      $region41: #{tpu_custom_call.1} parent=5 // pred_check
        %p2126 = pneg %p2125
      $region42: #{tpu_custom_call.1} parent=5 // pred_check_branch
        %2128 = sbr.rel (%p2126) target = $region44
      $region43: #{tpu_custom_call.1} parent=5 // pred_region
        %s2129 = ssub.s32 %s16, 2
        // Predicated region
        $region45: #{tpu_custom_call.1} parent=43 // pred_check
          %p2130 = pneg %p113
        $region46: #{tpu_custom_call.1} parent=43 // pred_check_branch
          %2132 = sbr.rel (%p2130) target = $region48
        $region47: #{tpu_custom_call.1} parent=43 // pred_region
          %s2133 = sand.u32 %s98, 1
          %s2134 = scalar_lea.sflag [#allocation5], %s2133
          %s2135 = sand.u32 %s98, 1
          %s2136 = scalar_lea.vmem [#allocation6], %s2135
          %2137 = dma.done %s2134, 16
        $region48: #{tpu_custom_call.1} parent=43 // pred_fallthru
          _
      $region44: #{tpu_custom_call.1} parent=5 // pred_fallthru
        _
    $region6: #{tpu_custom_call.1} parent=1 // loop_footer
      %s20 = sadd.s32 1, %s16
    $region7: #{tpu_custom_call.1} parent=1 // loop_footer_branch
      %15 = sbr.rel target = $region3
    $region8: #{tpu_custom_call.1} parent=1 // loop_exit
      _
    %2138 = vsyncpa [#allocation4], 1
    %s2139 = scalar_lea.sflag [#allocation4], 1
    %2140 = vsyncpa %s2139, 1
    %2141 = vsyncpa [#allocation5], 1
    %s2142 = scalar_lea.sflag [#allocation5], 1
    %2143 = vsyncpa %s2142, 1

</llo_original>
